<compile_context>
chip_gen: v5e
topology: v5e:2x2
jax: 0.10.0
libtpu: 0.0.40
codegen_flags: <defaults>
</compile_context>

<pallas_src>
import math

import jax
import jax.numpy as jnp
from jax.experimental import pallas as pl
from jax.experimental.pallas import tpu as pltpu


def _fused_constants(gaussian_matrix):
    """A, B, P of shape (2F,) such that pe_flat = sin(x*A + y*B + P)."""
    g = gaussian_matrix.astype(jnp.float32)          # (2, F)
    f = g.shape[1]
    four_pi = 4.0 * math.pi
    two_pi = 2.0 * math.pi
    a = jnp.tile(four_pi * g[0], 2)                  # multiplies x
    b = jnp.tile(four_pi * g[1], 2)                  # multiplies y
    base = -two_pi * (g[0] + g[1])                   # from the (2x-1), (2y-1) affine
    phase = jnp.concatenate(
        [jnp.zeros((f,), jnp.float32), jnp.full((f,), 0.5 * math.pi, jnp.float32)]
    )                                                # +pi/2 turns sin into cos
    p = jnp.tile(base, 2) + phase
    return a, b, p


def _pick_tile(hw, c, *, target_block_bytes=2 << 20, min_steps=2):
    """Lane tile over the flattened spatial axis.

    Prefer a multiple of 128 that divides hw (unmasked, lane-dense stores),
    fits the byte budget for a (c, tile) f32 block, and leaves >= min_steps
    grid steps (megacore sharding). Fall back to the full extent (always a
    legal block shape) when hw has no 128-multiple divisor.
    """
    bytes_per_col = 4 * c
    cands = [d for d in range(128, hw + 1, 128) if hw % d == 0]
    if not cands:
        return hw
    fits = [d for d in cands if d * bytes_per_col <= target_block_bytes]
    if not fits:
        return cands[0]
    multi = [d for d in fits if hw // d >= min_steps]
    return max(multi or fits)


def _pe_kernel(x_ref, y_ref, a_ref, b_ref, p_ref, o_ref):
    """One (C, T) block of pe = sin(x*A + y*B + P).

    x_ref, y_ref: (1, T)  normalized coords for this slab (sublane-broadcast).
    a_ref, b_ref, p_ref: (C, 1) fused constants (lane-broadcast columns).
    o_ref: (C, T) output block — lanes = flattened spatial axis.
    """
    x = x_ref[...]                                   # (1, T)
    y = y_ref[...]                                   # (1, T)
    a = a_ref[...]                                   # (C, 1)
    b = b_ref[...]
    p = p_ref[...]
    ang = x * a + y * b + p                          # (C, T) VPU mul-adds
    o_ref[...] = jnp.sin(ang)                        # single full-width EUP pass


def position_embedding_random_forward(gaussian_matrix, size, *,
                                       target_block_bytes=2 << 20):
    """Pallas equivalent of PositionEmbeddingRandom.forward(size).

    gaussian_matrix: (2, F) float32 buffer ('positional_encoding_gaussian_matrix').
    size:            (h, w) python ints.
    Returns:         (2F, h, w) float32, exactly the PyTorch layout.
    """
    h, w = int(size[0]), int(size[1])
    two, f = gaussian_matrix.shape
    assert two == 2
    c = 2 * f
    hw = h * w

    a, b, p = _fused_constants(gaussian_matrix)
    a2, b2, p2 = (v.reshape(c, 1) for v in (a, b, p))

    # Normalized pixel-center coordinates, flattened row-major: tiny XLA-side setup.
    cols = (jnp.arange(w, dtype=jnp.float32) + 0.5) / w
    rows = (jnp.arange(h, dtype=jnp.float32) + 0.5) / h
    x_flat = jnp.broadcast_to(cols[None, :], (h, w)).reshape(1, hw)
    y_flat = jnp.broadcast_to(rows[:, None], (h, w)).reshape(1, hw)

    tile = _pick_tile(hw, c, target_block_bytes=target_block_bytes)
    grid = (hw // tile,)

    const_spec = pl.BlockSpec((c, 1), lambda i: (0, 0))
    coord_spec = pl.BlockSpec((1, tile), lambda i: (0, i))

    out_flat = pl.pallas_call(
        _pe_kernel,
        out_shape=jax.ShapeDtypeStruct((c, hw), jnp.float32),
        grid_spec=pltpu.PrefetchScalarGridSpec(
            num_scalar_prefetch=0,
            grid=grid,
            in_specs=[coord_spec, coord_spec, const_spec, const_spec, const_spec],
            out_specs=pl.BlockSpec((c, tile), lambda i: (0, i)),
        ),
        compiler_params=pltpu.CompilerParams(dimension_semantics=("parallel",)),
    )(x_flat, y_flat, a2, b2, p2)

    # Contiguous reshape -> free; delivers the exact PyTorch (2F, h, w) layout.
    return out_flat.reshape(c, h, w)


def _reference_forward(gaussian_matrix, size):
    """Pure-JAX reference mirroring the PyTorch code, for validation."""
    h, w = size
    grid = jnp.ones((h, w), jnp.float32)
    y_embed = (jnp.cumsum(grid, axis=0) - 0.5) / h
    x_embed = (jnp.cumsum(grid, axis=1) - 0.5) / w
    coords = jnp.stack([x_embed, y_embed], axis=-1)
    coords = 2.0 * coords - 1.0
    coords = coords @ gaussian_matrix.astype(jnp.float32)
    coords = 2.0 * math.pi * coords
    pe = jnp.concatenate([jnp.sin(coords), jnp.cos(coords)], axis=-1)
    return jnp.transpose(pe, (2, 0, 1))


if __name__ == "__main__":
    num_pos_feats = 64
    scale = 1.0  # scale=None in the module -> 1.0

    # Deterministic synthetic buffer: scale * randn(2, num_pos_feats)
    key = jax.random.PRNGKey(0)
    gaussian_matrix = scale * jax.random.normal(
        key, (2, num_pos_feats), dtype=jnp.float32
    )

    # Main check: lane-dense path (h*w is a multiple of 128).
    size = (16, 16)
    ref = _reference_forward(gaussian_matrix, size)               # (2F, h, w)
    pe = position_embedding_random_forward(gaussian_matrix, size)
    pe = jax.block_until_ready(pe)
    assert pe.shape == (2 * num_pos_feats, size[0], size[1])
    assert pe.dtype == jnp.float32
    assert jnp.allclose(pe, ref, atol=5e-4, rtol=1e-4)

    # Extra check: h*w not a multiple of 128 (full-extent single-block fallback).
    size2 = (8, 24)
    ref2 = _reference_forward(gaussian_matrix, size2)
    pe2 = position_embedding_random_forward(gaussian_matrix, size2)
    pe2 = jax.block_until_ready(pe2)
    assert pe2.shape == (2 * num_pos_feats, size2[0], size2[1])
    assert jnp.allclose(pe2, ref2, atol=5e-4, rtol=1e-4)

    print("KERNEL_OK")
</pallas_src>

<mosaic_0001>
module attributes {stable_mosaic.version = 11 : i64} {
  func.func @_pe_kernel(%arg0: i32, %arg1: memref<1x128xf32, #tpu.memory_space<vmem>>, %arg2: memref<1x128xf32, #tpu.memory_space<vmem>>, %arg3: memref<128x1xf32, #tpu.memory_space<vmem>>, %arg4: memref<128x1xf32, #tpu.memory_space<vmem>>, %arg5: memref<128x1xf32, #tpu.memory_space<vmem>>, %arg6: memref<128x128xf32, #tpu.memory_space<vmem>>) attributes {dimension_semantics = [#tpu.dimension_semantics<parallel>], iteration_bounds = array<i64: 2>, scalar_prefetch = 0 : i64, scratch_operands = 0 : i64, tpu.core_type = #tpu.core_type<tc>, window_params = [{transform_indices = @transform_0, window_bounds = array<i64: 1, 128>}, {transform_indices = @transform_1, window_bounds = array<i64: 1, 128>}, {pipeline_mode = #tpu.pipeline_mode<synchronous>, transform_indices = @transform_2, window_bounds = array<i64: 128, 1>}, {pipeline_mode = #tpu.pipeline_mode<synchronous>, transform_indices = @transform_3, window_bounds = array<i64: 128, 1>}, {pipeline_mode = #tpu.pipeline_mode<synchronous>, transform_indices = @transform_4, window_bounds = array<i64: 128, 1>}, {transform_indices = @transform_5, window_bounds = array<i64: 128, 128>}]} {
    %c0 = arith.constant 0 : index
    %c0_0 = arith.constant 0 : index
    %0 = vector.load %arg1[%c0, %c0_0] : memref<1x128xf32, #tpu.memory_space<vmem>>, vector<1x128xf32>
    %c0_1 = arith.constant 0 : index
    %c0_2 = arith.constant 0 : index
    %1 = vector.load %arg2[%c0_1, %c0_2] : memref<1x128xf32, #tpu.memory_space<vmem>>, vector<1x128xf32>
    %c0_3 = arith.constant 0 : index
    %c0_4 = arith.constant 0 : index
    %2 = vector.load %arg3[%c0_3, %c0_4] : memref<128x1xf32, #tpu.memory_space<vmem>>, vector<128x1xf32>
    %c0_5 = arith.constant 0 : index
    %c0_6 = arith.constant 0 : index
    %3 = vector.load %arg4[%c0_5, %c0_6] : memref<128x1xf32, #tpu.memory_space<vmem>>, vector<128x1xf32>
    %c0_7 = arith.constant 0 : index
    %c0_8 = arith.constant 0 : index
    %4 = vector.load %arg5[%c0_7, %c0_8] : memref<128x1xf32, #tpu.memory_space<vmem>>, vector<128x1xf32>
    %5 = vector.broadcast %0 : vector<1x128xf32> to vector<128x128xf32>
    %6 = vector.broadcast %2 : vector<128x1xf32> to vector<128x128xf32>
    %7 = arith.mulf %5, %6 : vector<128x128xf32>
    %8 = vector.broadcast %1 : vector<1x128xf32> to vector<128x128xf32>
    %9 = vector.broadcast %3 : vector<128x1xf32> to vector<128x128xf32>
    %10 = arith.mulf %8, %9 : vector<128x128xf32>
    %11 = arith.addf %7, %10 : vector<128x128xf32>
    %12 = vector.broadcast %4 : vector<128x1xf32> to vector<128x128xf32>
    %13 = arith.addf %11, %12 : vector<128x128xf32>
    %14 = math.sin %13 : vector<128x128xf32>
    %c0_9 = arith.constant 0 : index
    %c0_10 = arith.constant 0 : index
    %15 = vector.load %arg6[%c0_9, %c0_10] : memref<128x128xf32, #tpu.memory_space<vmem>>, vector<128x128xf32>
    tpu.vector_store %arg6[%c0_9, %c0_10], %14 {strides = array<i32>} : memref<128x128xf32, #tpu.memory_space<vmem>>, vector<128x128xf32>,
    return
  }
  func.func @transform_0(%arg0: i32) -> (i32, i32) {
    %c0_i32 = arith.constant 0 : i32
    %c0_i32_0 = arith.constant 0 : i32
    return %c0_i32, %arg0 : i32, i32
  }
  func.func @transform_1(%arg0: i32) -> (i32, i32) {
    %c0_i32 = arith.constant 0 : i32
    %c0_i32_0 = arith.constant 0 : i32
    return %c0_i32, %arg0 : i32, i32
  }
  func.func @transform_2(%arg0: i32) -> (i32, i32) {
    %c0_i32 = arith.constant 0 : i32
    %c0_i32_0 = arith.constant 0 : i32
    %c0_i32_1 = arith.constant 0 : i32
    return %c0_i32, %c0_i32_0 : i32, i32
  }
  func.func @transform_3(%arg0: i32) -> (i32, i32) {
    %c0_i32 = arith.constant 0 : i32
    %c0_i32_0 = arith.constant 0 : i32
    %c0_i32_1 = arith.constant 0 : i32
    return %c0_i32, %c0_i32_0 : i32, i32
  }
  func.func @transform_4(%arg0: i32) -> (i32, i32) {
    %c0_i32 = arith.constant 0 : i32
    %c0_i32_0 = arith.constant 0 : i32
    %c0_i32_1 = arith.constant 0 : i32
    return %c0_i32, %c0_i32_0 : i32, i32
  }
  func.func @transform_5(%arg0: i32) -> (i32, i32) {
    %c0_i32 = arith.constant 0 : i32
    %c0_i32_0 = arith.constant 0 : i32
    return %c0_i32, %arg0 : i32, i32
  }
}

</mosaic_0001>

<llo_original>
// kernel: tpu_custom_call.1
$region0: #{tpu_custom_call.1}
  #allocation0 [shape = 'u32[]', space=smem, size = 0x4, offset = 0x4, fixed_abs, tag = 'smem constant byte address 0x4 - core index']
  #allocation1 [shape = 'u32[72,128]{1,0:T(1,128)}', space=vmem, size = 0x9000, scoped, tag = 'internal scratch']
  %s0 = inlined_call_operand.vmem [shape: f32[1,256], index: 0, kind: input, shape index: {}]
  %s1 = inlined_call_operand.vmem [shape: f32[1,256], index: 1, kind: input, shape index: {}]
  %s2 = inlined_call_operand.vmem [shape: f32[128,1], index: 2, kind: input, shape index: {}]
  %s3 = inlined_call_operand.vmem [shape: f32[128,1], index: 3, kind: input, shape index: {}]
  %s4 = inlined_call_operand.vmem [shape: f32[128,1], index: 4, kind: input, shape index: {}]
  %s5 = inlined_call_operand.hbm [shape: f32[128,256], index: 5, kind: output, shape index: {}]
  %s6 = sld [smem:[#allocation0]]
  $region53: #{tpu_custom_call.1} parent=0
    _
  %s8 = ssub.s32 1, %s6
  %s9 = scalar_select 0, %s8, %s6
  $region1: #{tpu_custom_call.1} parent=0
    #allocation2 [shape = 'u8[131072]{0}', space=vmem, size = 0x20000, scoped, tag = 'output window, operand 0']
    #allocation3 [shape = 's32[2]{0}', space=sflag, size = 0x8, scoped, tag = 'scoped memory for tpu_custom_call.1']
    %10 = vsyncpa [#allocation3], 0
    %s11 = scalar_lea.sflag [#allocation3], 1
    %12 = vsyncpa %s11, 0
    loop: start=0, step=1, limit=4
    $region2: #{tpu_custom_call.1} parent=1 // loop_pre_header
      _
    $region3: #{tpu_custom_call.1} parent=1 // loop_header
      %s14 = sphi 0, %s18
      %p15 = scmp.ge.s32.totalorder %s14, 4
      %s24 = sphi 0, %s26
      %s27 = sphi 0, %s24
      %s28 = sphi 0, %s27
      %s44 = sphi 0, %s28
      %s50 = sphi 0, %s52
      %s53 = sphi 0, %s50
      %s54 = sphi 0, %s53
      %s70 = sphi 0, %s54
      %s74 = sphi 0, %s74
      %s76 = sphi 0, %s74
      %s77 = sphi 0, %s76
      %s91 = sphi 0, %s77
      %s95 = sphi 0, %s95
      %s97 = sphi 0, %s95
      %s98 = sphi 0, %s97
      %s112 = sphi 0, %s98
      %s116 = sphi 0, %s116
      %s118 = sphi 0, %s116
      %s119 = sphi 0, %s118
      %s133 = sphi 0, %s119
      %s139 = sphi 0, %s141
      %s142 = sphi 0, %s139
      %s143 = sphi 0, %s142
      %s159 = sphi 0, %s143
    $region4: #{tpu_custom_call.1} parent=1 // loop_header_branch
      %17 = sbr.rel (%p15) target = $region8
    $region5: #{tpu_custom_call.1} parent=1 // loop_body
      %s19 = ssub.s32 %s14, 1
      %s20 = ssub.s32 %s14, 2
      %s21 = sadd.s32 %s14, 1
      %s22 = ssub.s32 %s14, %s21
      %p23 = scmp.eq.s32.totalorder %s22, 0
      %s25 = sadd.s32 %s24, 1
      %s26 = scalar_select %p23, %s24, %s25
      %p29 = pneg %p23
      %p30 = scmp.eq.s32.totalorder %s14, 1
      %p31 = por %p29, %p30
      %p32 = scmp.ne.s32.totalorder %s24, %s27
      %p33 = scmp.eq.s32.totalorder %s14, 0
      %p34 = por %p32, %p33
      %p35 = scmp.ne.s32.totalorder %s24, %s27
      %p36 = scmp.eq.s32.totalorder %s19, 1
      %p37 = por %p35, %p36
      %p38 = scmp.ne.s32.totalorder %s27, %s28
      %p39 = scmp.eq.s32.totalorder %s19, 0
      %p40 = por %p38, %p39
      %p41 = scmp.ne.s32.totalorder %s27, %s28
      %p42 = scmp.eq.s32.totalorder %s20, 1
      %p43 = por %p41, %p42
      %p45 = scmp.ne.s32.totalorder %s28, %s44
      %p46 = scmp.eq.s32.totalorder %s20, 0
      %p47 = por %p45, %p46
      %s48 = ssub.s32 %s14, %s21
      %p49 = scmp.eq.s32.totalorder %s48, 0
      %s51 = sadd.s32 %s50, 1
      %s52 = scalar_select %p49, %s50, %s51
      %p55 = pneg %p49
      %p56 = scmp.eq.s32.totalorder %s14, 1
      %p57 = por %p55, %p56
      %p58 = scmp.ne.s32.totalorder %s50, %s53
      %p59 = scmp.eq.s32.totalorder %s14, 0
      %p60 = por %p58, %p59
      %p61 = scmp.ne.s32.totalorder %s50, %s53
      %p62 = scmp.eq.s32.totalorder %s19, 1
      %p63 = por %p61, %p62
      %p64 = scmp.ne.s32.totalorder %s53, %s54
      %p65 = scmp.eq.s32.totalorder %s19, 0
      %p66 = por %p64, %p65
      %p67 = scmp.ne.s32.totalorder %s53, %s54
      %p68 = scmp.eq.s32.totalorder %s20, 1
      %p69 = por %p67, %p68
      %p71 = scmp.ne.s32.totalorder %s54, %s70
      %p72 = scmp.eq.s32.totalorder %s20, 0
      %p73 = por %p71, %p72
      %s75 = sadd.s32 %s74, 1
      %p78 = scmp.eq.s32.totalorder %s14, 1
      %p79 = scmp.ne.s32.totalorder %s74, %s76
      %p80 = scmp.eq.s32.totalorder %s14, 0
      %p81 = por %p79, %p80
      %p82 = scmp.ne.s32.totalorder %s74, %s76
      %p83 = scmp.eq.s32.totalorder %s19, 1
      %p84 = por %p82, %p83
      %p85 = scmp.ne.s32.totalorder %s76, %s77
      %p86 = scmp.eq.s32.totalorder %s19, 0
      %p87 = por %p85, %p86
      %p88 = scmp.ne.s32.totalorder %s76, %s77
      %p89 = scmp.eq.s32.totalorder %s20, 1
      %p90 = por %p88, %p89
      %p92 = scmp.ne.s32.totalorder %s77, %s91
      %p93 = scmp.eq.s32.totalorder %s20, 0
      %p94 = por %p92, %p93
      %s96 = sadd.s32 %s95, 1
      %p99 = scmp.eq.s32.totalorder %s14, 1
      %p100 = scmp.ne.s32.totalorder %s95, %s97
      %p101 = scmp.eq.s32.totalorder %s14, 0
      %p102 = por %p100, %p101
      %p103 = scmp.ne.s32.totalorder %s95, %s97
      %p104 = scmp.eq.s32.totalorder %s19, 1
      %p105 = por %p103, %p104
      %p106 = scmp.ne.s32.totalorder %s97, %s98
      %p107 = scmp.eq.s32.totalorder %s19, 0
      %p108 = por %p106, %p107
      %p109 = scmp.ne.s32.totalorder %s97, %s98
      %p110 = scmp.eq.s32.totalorder %s20, 1
      %p111 = por %p109, %p110
      %p113 = scmp.ne.s32.totalorder %s98, %s112
      %p114 = scmp.eq.s32.totalorder %s20, 0
      %p115 = por %p113, %p114
      %s117 = sadd.s32 %s116, 1
      %p120 = scmp.eq.s32.totalorder %s14, 1
      %p121 = scmp.ne.s32.totalorder %s116, %s118
      %p122 = scmp.eq.s32.totalorder %s14, 0
      %p123 = por %p121, %p122
      %p124 = scmp.ne.s32.totalorder %s116, %s118
      %p125 = scmp.eq.s32.totalorder %s19, 1
      %p126 = por %p124, %p125
      %p127 = scmp.ne.s32.totalorder %s118, %s119
      %p128 = scmp.eq.s32.totalorder %s19, 0
      %p129 = por %p127, %p128
      %p130 = scmp.ne.s32.totalorder %s118, %s119
      %p131 = scmp.eq.s32.totalorder %s20, 1
      %p132 = por %p130, %p131
      %p134 = scmp.ne.s32.totalorder %s119, %s133
      %p135 = scmp.eq.s32.totalorder %s20, 0
      %p136 = por %p134, %p135
      %s137 = ssub.s32 %s14, %s21
      %p138 = scmp.eq.s32.totalorder %s137, 0
      %s140 = sadd.s32 %s139, 1
      %s141 = scalar_select %p138, %s139, %s140
      %p144 = pneg %p138
      %p145 = scmp.eq.s32.totalorder %s14, 1
      %p146 = por %p144, %p145
      %p147 = scmp.ne.s32.totalorder %s139, %s142
      %p148 = scmp.eq.s32.totalorder %s14, 0
      %p149 = por %p147, %p148
      %p150 = scmp.ne.s32.totalorder %s139, %s142
      %p151 = scmp.eq.s32.totalorder %s19, 1
      %p152 = por %p150, %p151
      %p153 = scmp.ne.s32.totalorder %s142, %s143
      %p154 = scmp.eq.s32.totalorder %s19, 0
      %p155 = por %p153, %p154
      %p156 = scmp.ne.s32.totalorder %s142, %s143
      %p157 = scmp.eq.s32.totalorder %s20, 1
      %p158 = por %p156, %p157
      %p160 = scmp.ne.s32.totalorder %s143, %s159
      %p161 = scmp.eq.s32.totalorder %s20, 0
      %p162 = por %p160, %p161
      %p163 = scmp.le.s32.totalorder 1, %s14
      %p164 = scmp.lt.s32.totalorder %s14, 3
      %p165 = pnand %p163, %p164
      %p166 = pneg %p165
      // Predicated region
      $region9: #{tpu_custom_call.1} parent=5 // pred_check
        _
      $region10: #{tpu_custom_call.1} parent=5 // pred_check_branch
        %168 = sbr.rel (%p165) target = $region12
      $region11: #{tpu_custom_call.1} parent=5 // pred_region
        %s169 = ssub.s32 %s14, 1
        // Predicated region
        $region13: #{tpu_custom_call.1} parent=11 // pred_check
          %p170 = pneg %p87
        $region14: #{tpu_custom_call.1} parent=11 // pred_check_branch
          %172 = sbr.rel (%p170) target = $region16
        $region15: #{tpu_custom_call.1} parent=11 // pred_region
          _
        $region16: #{tpu_custom_call.1} parent=11 // pred_fallthru
          _
        // Predicated region
        $region17: #{tpu_custom_call.1} parent=11 // pred_check
          %p173 = pneg %p108
        $region18: #{tpu_custom_call.1} parent=11 // pred_check_branch
          %175 = sbr.rel (%p173) target = $region20
        $region19: #{tpu_custom_call.1} parent=11 // pred_region
          _
        $region20: #{tpu_custom_call.1} parent=11 // pred_fallthru
          _
        // Predicated region
        $region21: #{tpu_custom_call.1} parent=11 // pred_check
          %p176 = pneg %p129
        $region22: #{tpu_custom_call.1} parent=11 // pred_check_branch
          %178 = sbr.rel (%p176) target = $region24
        $region23: #{tpu_custom_call.1} parent=11 // pred_region
          _
        $region24: #{tpu_custom_call.1} parent=11 // pred_fallthru
          _
      $region12: #{tpu_custom_call.1} parent=5 // pred_fallthru
        _
      %p179 = scmp.lt.s32.totalorder %s14, 2
      // Predicated region
      $region25: #{tpu_custom_call.1} parent=5 // pred_check
        %p180 = pneg %p179
      $region26: #{tpu_custom_call.1} parent=5 // pred_check_branch
        %182 = sbr.rel (%p180) target = $region28
      $region27: #{tpu_custom_call.1} parent=5 // pred_region
        // Predicated region
        $region29: #{tpu_custom_call.1} parent=27 // pred_check
          %p183 = pneg %p34
        $region30: #{tpu_custom_call.1} parent=27 // pred_check_branch
          %185 = sbr.rel (%p183) target = $region32
        $region31: #{tpu_custom_call.1} parent=27 // pred_region
          %p186 = scmp.lt.s32.totalorder %s14, 1
          %s187 = scalar_select %p186, %s14, 1
          %s188 = scalar_lea.vmem %s0, %s187
        $region32: #{tpu_custom_call.1} parent=27 // pred_fallthru
          _
        // Predicated region
        $region33: #{tpu_custom_call.1} parent=27 // pred_check
          %p189 = pneg %p60
        $region34: #{tpu_custom_call.1} parent=27 // pred_check_branch
          %191 = sbr.rel (%p189) target = $region36
        $region35: #{tpu_custom_call.1} parent=27 // pred_region
          %p192 = scmp.lt.s32.totalorder %s14, 1
          %s193 = scalar_select %p192, %s14, 1
          %s194 = scalar_lea.vmem %s1, %s193
        $region36: #{tpu_custom_call.1} parent=27 // pred_fallthru
          _
      $region28: #{tpu_custom_call.1} parent=5 // pred_fallthru
        _
      %p195 = scmp.le.s32.totalorder 1, %s14
      %p196 = scmp.lt.s32.totalorder %s14, 3
      %p197 = pnand %p195, %p196
      %p198 = pneg %p197
      // Predicated region
      $region37: #{tpu_custom_call.1} parent=5 // pred_check
        _
      $region38: #{tpu_custom_call.1} parent=5 // pred_check_branch
        %200 = sbr.rel (%p197) target = $region40
      $region39: #{tpu_custom_call.1} parent=5 // pred_region
        %s201 = ssub.s32 %s14, 1
        %p202 = scmp.lt.s32.totalorder %s19, 1
        %s203 = scalar_select %p202, %s19, 1
        %s204 = scalar_lea.vmem %s0, %s203
        %p205 = pneg %p40
        %p206 = pneg %p37
        %p207 = scmp.lt.s32.totalorder %s19, 1
        %s208 = scalar_select %p207, %s19, 1
        %s209 = scalar_lea.vmem %s1, %s208
        %p210 = pneg %p66
        %p211 = pneg %p63
        %p212 = pneg %p87
        %p213 = pneg %p84
        %p214 = pneg %p108
        %p215 = pneg %p105
        %p216 = pneg %p129
        %p217 = pneg %p126
        %p218 = pneg %p155
        %p219 = pneg %p152
        %s220 = sand.u32 %s142, 1
        %s221 = scalar_lea.sflag [#allocation3], %s220
        %s222 = sand.u32 %s142, 1
        %s223 = smul.addr %s222, 128
        %s224 = scalar_lea.vmem [#allocation2], %s223
        %p225 = scmp.lt.s32.totalorder %s19, 1
        %s226 = scalar_select %p225, %s19, 1
        %s227 = scalar_lea.vmem %s0, %s226
        %p228 = scmp.lt.s32.totalorder %s19, 1
        %s229 = scalar_select %p228, %s19, 1
        %s230 = scalar_lea.vmem %s1, %s229
        %v231 = vld [vmem:[%s227] sm:$0x1]
        %v232 = vld [vmem:[%s230] sm:$0x1]
        %v233 = vld [vmem:[%s2] sm:$0xff]
        %v234 = vld [vmem:[%s2 + $0x8] sm:$0xff]
        %v235 = vld [vmem:[%s2 + $0x10] sm:$0xff]
        %v236 = vld [vmem:[%s2 + $0x18] sm:$0xff]
        %v237 = vld [vmem:[%s2 + $0x20] sm:$0xff]
        %v238 = vld [vmem:[%s2 + $0x28] sm:$0xff]
        %v239 = vld [vmem:[%s2 + $0x30] sm:$0xff]
        %v240 = vld [vmem:[%s2 + $0x38] sm:$0xff]
        %v241 = vld [vmem:[%s2 + $0x40] sm:$0xff]
        %v242 = vld [vmem:[%s2 + $0x48] sm:$0xff]
        %v243 = vld [vmem:[%s2 + $0x50] sm:$0xff]
        %v244 = vld [vmem:[%s2 + $0x58] sm:$0xff]
        %v245 = vld [vmem:[%s2 + $0x60] sm:$0xff]
        %v246 = vld [vmem:[%s2 + $0x68] sm:$0xff]
        %v247 = vld [vmem:[%s2 + $0x70] sm:$0xff]
        %v248 = vld [vmem:[%s2 + $0x78] sm:$0xff]
        %v249 = vld [vmem:[%s3] sm:$0xff]
        %v250 = vld [vmem:[%s3 + $0x8] sm:$0xff]
        %v251 = vld [vmem:[%s3 + $0x10] sm:$0xff]
        %v252 = vld [vmem:[%s3 + $0x18] sm:$0xff]
        %v253 = vld [vmem:[%s3 + $0x20] sm:$0xff]
        %v254 = vld [vmem:[%s3 + $0x28] sm:$0xff]
        %v255 = vld [vmem:[%s3 + $0x30] sm:$0xff]
        %v256 = vld [vmem:[%s3 + $0x38] sm:$0xff]
        %v257 = vld [vmem:[%s3 + $0x40] sm:$0xff]
        %v258 = vld [vmem:[%s3 + $0x48] sm:$0xff]
        %v259 = vld [vmem:[%s3 + $0x50] sm:$0xff]
        %v260 = vld [vmem:[%s3 + $0x58] sm:$0xff]
        %v261 = vld [vmem:[%s3 + $0x60] sm:$0xff]
        %v262 = vld [vmem:[%s3 + $0x68] sm:$0xff]
        %v263 = vld [vmem:[%s3 + $0x70] sm:$0xff]
        %v264 = vld [vmem:[%s3 + $0x78] sm:$0xff]
        %v265 = vld [vmem:[%s4] sm:$0xff]
        %v266 = vld [vmem:[%s4 + $0x8] sm:$0xff]
        %v267 = vld [vmem:[%s4 + $0x10] sm:$0xff]
        %v268 = vld [vmem:[%s4 + $0x18] sm:$0xff]
        %v269 = vld [vmem:[%s4 + $0x20] sm:$0xff]
        %v270 = vld [vmem:[%s4 + $0x28] sm:$0xff]
        %v271 = vld [vmem:[%s4 + $0x30] sm:$0xff]
        %v272 = vld [vmem:[%s4 + $0x38] sm:$0xff]
        %v273 = vld [vmem:[%s4 + $0x40] sm:$0xff]
        %v274 = vld [vmem:[%s4 + $0x48] sm:$0xff]
        %v275 = vld [vmem:[%s4 + $0x50] sm:$0xff]
        %v276 = vld [vmem:[%s4 + $0x58] sm:$0xff]
        %v277 = vld [vmem:[%s4 + $0x60] sm:$0xff]
        %v278 = vld [vmem:[%s4 + $0x68] sm:$0xff]
        %v279 = vld [vmem:[%s4 + $0x70] sm:$0xff]
        %v280 = vld [vmem:[%s4 + $0x78] sm:$0xff]
        %v282 = vperm.slane %v231, 0
        %285 = vset.pattern.permute.xlu0 0
        %286 = vperm.xlu0 %285, %v233
        %v287 = vpop.permute.xlu0 %286
        %290 = vset.pattern.permute.xlu0 0
        %291 = vperm.xlu0 %290, %v234
        %v292 = vpop.permute.xlu0 %291
        %295 = vset.pattern.permute.xlu0 0
        %296 = vperm.xlu0 %295, %v235
        %v297 = vpop.permute.xlu0 %296
        %300 = vset.pattern.permute.xlu0 0
        %301 = vperm.xlu0 %300, %v236
        %v302 = vpop.permute.xlu0 %301
        %305 = vset.pattern.permute.xlu0 0
        %306 = vperm.xlu0 %305, %v237
        %v307 = vpop.permute.xlu0 %306
        %310 = vset.pattern.permute.xlu0 0
        %311 = vperm.xlu0 %310, %v238
        %v312 = vpop.permute.xlu0 %311
        %315 = vset.pattern.permute.xlu0 0
        %316 = vperm.xlu0 %315, %v239
        %v317 = vpop.permute.xlu0 %316
        %320 = vset.pattern.permute.xlu0 0
        %321 = vperm.xlu0 %320, %v240
        %v322 = vpop.permute.xlu0 %321
        %325 = vset.pattern.permute.xlu0 0
        %326 = vperm.xlu0 %325, %v241
        %v327 = vpop.permute.xlu0 %326
        %330 = vset.pattern.permute.xlu0 0
        %331 = vperm.xlu0 %330, %v242
        %v332 = vpop.permute.xlu0 %331
        %335 = vset.pattern.permute.xlu0 0
        %336 = vperm.xlu0 %335, %v243
        %v337 = vpop.permute.xlu0 %336
        %340 = vset.pattern.permute.xlu0 0
        %341 = vperm.xlu0 %340, %v244
        %v342 = vpop.permute.xlu0 %341
        %345 = vset.pattern.permute.xlu0 0
        %346 = vperm.xlu0 %345, %v245
        %v347 = vpop.permute.xlu0 %346
        %350 = vset.pattern.permute.xlu0 0
        %351 = vperm.xlu0 %350, %v246
        %v352 = vpop.permute.xlu0 %351
        %355 = vset.pattern.permute.xlu0 0
        %356 = vperm.xlu0 %355, %v247
        %v357 = vpop.permute.xlu0 %356
        %360 = vset.pattern.permute.xlu0 0
        %361 = vperm.xlu0 %360, %v248
        %v362 = vpop.permute.xlu0 %361
        %v364 = vmul.f32 %v282, %v287
        %v365 = vmul.f32 %v282, %v292
        %v366 = vmul.f32 %v282, %v297
        %v367 = vmul.f32 %v282, %v302
        %v368 = vmul.f32 %v282, %v307
        %v369 = vmul.f32 %v282, %v312
        %v370 = vmul.f32 %v282, %v317
        %v371 = vmul.f32 %v282, %v322
        %v372 = vmul.f32 %v282, %v327
        %v373 = vmul.f32 %v282, %v332
        %v374 = vmul.f32 %v282, %v337
        %v375 = vmul.f32 %v282, %v342
        %v376 = vmul.f32 %v282, %v347
        %v377 = vmul.f32 %v282, %v352
        %v378 = vmul.f32 %v282, %v357
        %v379 = vmul.f32 %v282, %v362
        %v381 = vperm.slane %v232, 0
        %384 = vset.pattern.permute.xlu0 0
        %385 = vperm.xlu0 %384, %v249
        %v386 = vpop.permute.xlu0 %385
        %389 = vset.pattern.permute.xlu0 0
        %390 = vperm.xlu0 %389, %v250
        %v391 = vpop.permute.xlu0 %390
        %394 = vset.pattern.permute.xlu0 0
        %395 = vperm.xlu0 %394, %v251
        %v396 = vpop.permute.xlu0 %395
        %399 = vset.pattern.permute.xlu0 0
        %400 = vperm.xlu0 %399, %v252
        %v401 = vpop.permute.xlu0 %400
        %404 = vset.pattern.permute.xlu0 0
        %405 = vperm.xlu0 %404, %v253
        %v406 = vpop.permute.xlu0 %405
        %409 = vset.pattern.permute.xlu0 0
        %410 = vperm.xlu0 %409, %v254
        %v411 = vpop.permute.xlu0 %410
        %414 = vset.pattern.permute.xlu0 0
        %415 = vperm.xlu0 %414, %v255
        %v416 = vpop.permute.xlu0 %415
        %419 = vset.pattern.permute.xlu0 0
        %420 = vperm.xlu0 %419, %v256
        %v421 = vpop.permute.xlu0 %420
        %424 = vset.pattern.permute.xlu0 0
        %425 = vperm.xlu0 %424, %v257
        %v426 = vpop.permute.xlu0 %425
        %429 = vset.pattern.permute.xlu0 0
        %430 = vperm.xlu0 %429, %v258
        %v431 = vpop.permute.xlu0 %430
        %434 = vset.pattern.permute.xlu0 0
        %435 = vperm.xlu0 %434, %v259
        %v436 = vpop.permute.xlu0 %435
        %439 = vset.pattern.permute.xlu0 0
        %440 = vperm.xlu0 %439, %v260
        %v441 = vpop.permute.xlu0 %440
        %444 = vset.pattern.permute.xlu0 0
        %445 = vperm.xlu0 %444, %v261
        %v446 = vpop.permute.xlu0 %445
        %449 = vset.pattern.permute.xlu0 0
        %450 = vperm.xlu0 %449, %v262
        %v451 = vpop.permute.xlu0 %450
        %454 = vset.pattern.permute.xlu0 0
        %455 = vperm.xlu0 %454, %v263
        %v456 = vpop.permute.xlu0 %455
        %459 = vset.pattern.permute.xlu0 0
        %460 = vperm.xlu0 %459, %v264
        %v461 = vpop.permute.xlu0 %460
        %v463 = vmul.f32 %v381, %v386
        %v464 = vmul.f32 %v381, %v391
        %v465 = vmul.f32 %v381, %v396
        %v466 = vmul.f32 %v381, %v401
        %v467 = vmul.f32 %v381, %v406
        %v468 = vmul.f32 %v381, %v411
        %v469 = vmul.f32 %v381, %v416
        %v470 = vmul.f32 %v381, %v421
        %v471 = vmul.f32 %v381, %v426
        %v472 = vmul.f32 %v381, %v431
        %v473 = vmul.f32 %v381, %v436
        %v474 = vmul.f32 %v381, %v441
        %v475 = vmul.f32 %v381, %v446
        %v476 = vmul.f32 %v381, %v451
        %v477 = vmul.f32 %v381, %v456
        %v478 = vmul.f32 %v381, %v461
        %v479 = vadd.f32 %v364, %v463
        %v480 = vadd.f32 %v365, %v464
        %v481 = vadd.f32 %v366, %v465
        %v482 = vadd.f32 %v367, %v466
        %v483 = vadd.f32 %v368, %v467
        %v484 = vadd.f32 %v369, %v468
        %v485 = vadd.f32 %v370, %v469
        %v486 = vadd.f32 %v371, %v470
        %v487 = vadd.f32 %v372, %v471
        %v488 = vadd.f32 %v373, %v472
        %v489 = vadd.f32 %v374, %v473
        %v490 = vadd.f32 %v375, %v474
        %v491 = vadd.f32 %v376, %v475
        %v492 = vadd.f32 %v377, %v476
        %v493 = vadd.f32 %v378, %v477
        %v494 = vadd.f32 %v379, %v478
        %496 = vset.pattern.permute.xlu0 0
        %497 = vperm.xlu0 %496, %v265
        %v498 = vpop.permute.xlu0 %497
        %501 = vset.pattern.permute.xlu0 0
        %502 = vperm.xlu0 %501, %v266
        %v503 = vpop.permute.xlu0 %502
        %506 = vset.pattern.permute.xlu0 0
        %507 = vperm.xlu0 %506, %v267
        %v508 = vpop.permute.xlu0 %507
        %511 = vset.pattern.permute.xlu0 0
        %512 = vperm.xlu0 %511, %v268
        %v513 = vpop.permute.xlu0 %512
        %516 = vset.pattern.permute.xlu0 0
        %517 = vperm.xlu0 %516, %v269
        %v518 = vpop.permute.xlu0 %517
        %521 = vset.pattern.permute.xlu0 0
        %522 = vperm.xlu0 %521, %v270
        %v523 = vpop.permute.xlu0 %522
        %526 = vset.pattern.permute.xlu0 0
        %527 = vperm.xlu0 %526, %v271
        %v528 = vpop.permute.xlu0 %527
        %531 = vset.pattern.permute.xlu0 0
        %532 = vperm.xlu0 %531, %v272
        %v533 = vpop.permute.xlu0 %532
        %536 = vset.pattern.permute.xlu0 0
        %537 = vperm.xlu0 %536, %v273
        %v538 = vpop.permute.xlu0 %537
        %541 = vset.pattern.permute.xlu0 0
        %542 = vperm.xlu0 %541, %v274
        %v543 = vpop.permute.xlu0 %542
        %546 = vset.pattern.permute.xlu0 0
        %547 = vperm.xlu0 %546, %v275
        %v548 = vpop.permute.xlu0 %547
        %551 = vset.pattern.permute.xlu0 0
        %552 = vperm.xlu0 %551, %v276
        %v553 = vpop.permute.xlu0 %552
        %556 = vset.pattern.permute.xlu0 0
        %557 = vperm.xlu0 %556, %v277
        %v558 = vpop.permute.xlu0 %557
        %561 = vset.pattern.permute.xlu0 0
        %562 = vperm.xlu0 %561, %v278
        %v563 = vpop.permute.xlu0 %562
        %566 = vset.pattern.permute.xlu0 0
        %567 = vperm.xlu0 %566, %v279
        %v568 = vpop.permute.xlu0 %567
        %571 = vset.pattern.permute.xlu0 0
        %572 = vperm.xlu0 %571, %v280
        %v573 = vpop.permute.xlu0 %572
        %v575 = vadd.f32 %v479, %v498
        %v576 = vadd.f32 %v480, %v503
        %v577 = vadd.f32 %v481, %v508
        %v578 = vadd.f32 %v482, %v513
        %v579 = vadd.f32 %v483, %v518
        %v580 = vadd.f32 %v484, %v523
        %v581 = vadd.f32 %v485, %v528
        %v582 = vadd.f32 %v486, %v533
        %v583 = vadd.f32 %v487, %v538
        %v584 = vadd.f32 %v488, %v543
        %v585 = vadd.f32 %v489, %v548
        %v586 = vadd.f32 %v490, %v553
        %v587 = vadd.f32 %v491, %v558
        %v588 = vadd.f32 %v492, %v563
        %v589 = vadd.f32 %v493, %v568
        %v590 = vadd.f32 %v494, %v573
        %v591 = vand.u32 2147483647, %v575
        %vm592 = vcmp.le.f32.partialorder %v591, 0.7853982
        %vm593 = vcmp.lt.s32.totalorder %v575, 0
        %v594 = vand.u32 %v575, 2139095040
        %v595 = vshrl.u32 %v594, 23
        %v596 = vsub.s32 %v595, 127
        %v597 = vand.u32 2147483647, %v575
        %v598 = vand.u32 %v597, 8388607
        %v599 = vor.u32 %v598, 8388608
        %v600 = vsub.s32 0, %v599
        %v601 = vadd.s32 %v596, 1
        %vm602 = vcmp.gt.s32.totalorder %v601, 0
        %v603 = vsel %vm602, %v601, 0
        %v604 = vshrl.u32 %v603, 5
        %v605 = vand.u32 %v603, 31
        %v606 = vsub.s32 32, %v605
        %v607 = vshrl.u32 683565275, %v606
        %v608 = vshll.u32 683565275, %v605
        %v609 = vshrl.u32 2475754826, %v606
        %v610 = vor.u32 %v608, %v609
        %v611 = vshll.u32 2475754826, %v605
        %v612 = vshrl.u32 2131351028, %v606
        %v613 = vor.u32 %v611, %v612
        %v614 = vshll.u32 2131351028, %v605
        %v615 = vshrl.u32 2102212464, %v606
        %v616 = vor.u32 %v614, %v615
        %v617 = vshll.u32 2102212464, %v605
        %v618 = vshrl.u32 920167782, %v606
        %v619 = vor.u32 %v617, %v618
        %v620 = vshll.u32 920167782, %v605
        %v621 = vshrl.u32 1326507024, %v606
        %v622 = vor.u32 %v620, %v621
        %vm623 = vcmp.lt.s32.totalorder %v604, 1
        %vm624 = vcmp.lt.s32.totalorder %v604, 2
        %vm625 = vcmp.lt.s32.totalorder %v604, 3
        %vm626 = vcmp.lt.s32.totalorder %v604, 4
        %v627 = vsel %vm623, %v607, %v610
        %v628 = vsel %vm626, %v616, 2102212464
        %v629 = vsel %vm625, %v613, %v628
        %v630 = vsel %vm624, %v627, %v629
        %v631 = vsel %vm623, %v610, %v613
        %v632 = vsel %vm626, %v619, 920167782
        %v633 = vsel %vm625, %v616, %v632
        %v634 = vsel %vm624, %v631, %v633
        %v635 = vsel %vm623, %v613, %v616
        %v636 = vsel %vm626, %v622, 1326507024
        %v637 = vsel %vm625, %v619, %v636
        %v638 = vsel %vm624, %v635, %v637
        %v639 = vshll.u32 %v599, 8
        %v640 = vand.u32 %v639, 65535
        %v641 = vshrl.u32 %v639, 16
        %v642 = vand.u32 %v638, 65535
        %v643 = vshrl.u32 %v638, 16
        %v644 = vmul.u32 %v640, %v642
        %v645 = vmul.u32 %v640, %v643
        %v646 = vmul.u32 %v641, %v642
        %v647 = vmul.u32 %v641, %v643
        %v648 = vshll.u32 %v645, 16
        %v649 = vshrl.u32 %v645, 16
        %v650 = vshll.u32 %v646, 16
        %v651 = vshrl.u32 %v646, 16
        %vm652 = vc.u32 %v644, %v648
        %v653 = vsel %vm652, 1, 0
        %v654 = vadd.s32 %v644, %v648
        %v655 = vadd.s32 %v647, %v653
        %vm656 = vc.u32 %v654, %v650
        %v657 = vsel %vm656, 1, 0
        %v658 = vadd.s32 %v654, %v650
        %v659 = vadd.s32 %v655, %v657
        %v660 = vadd.s32 %v659, %v649
        %v661 = vadd.s32 %v660, %v651
        %v662 = vand.u32 %v639, 65535
        %v663 = vshrl.u32 %v639, 16
        %v664 = vand.u32 %v634, 65535
        %v665 = vshrl.u32 %v634, 16
        %v666 = vmul.u32 %v662, %v664
        %v667 = vmul.u32 %v662, %v665
        %v668 = vmul.u32 %v663, %v664
        %v669 = vmul.u32 %v663, %v665
        %v670 = vshll.u32 %v667, 16
        %v671 = vshrl.u32 %v667, 16
        %v672 = vshll.u32 %v668, 16
        %v673 = vshrl.u32 %v668, 16
        %vm674 = vc.u32 %v666, %v670
        %v675 = vsel %vm674, 1, 0
        %v676 = vadd.s32 %v666, %v670
        %v677 = vadd.s32 %v669, %v675
        %vm678 = vc.u32 %v676, %v672
        %v679 = vsel %vm678, 1, 0
        %v680 = vadd.s32 %v676, %v672
        %v681 = vadd.s32 %v677, %v679
        %v682 = vadd.s32 %v681, %v671
        %v683 = vadd.s32 %v682, %v673
        %v684 = vmul.u32 %v639, %v630
        %v685 = vadd.s32 %v661, %v680
        %vm686 = vc.u32 %v661, %v680
        %v687 = vadd.s32 %v683, 1
        %v688 = vsel %vm686, %v687, %v683
        %v689 = vadd.s32 %v684, %v688
        %v690 = vadd.s32 %v689, 536870912
        %v691 = vshrl.u32 %v690, 30
        %v692 = vshll.u32 %v691, 30
        %v693 = vsub.s32 %v689, %v692
        %vm694 = vcmp.lt.s32.totalorder %v693, 0
        %v695 = vsub.s32 0, %v693
        %v696 = vsel %vm694, %v695, %v693
        %v697 = vclz %v696
        %v698 = vsub.s32 %v697, 2
        %vm699 = vcmp.gt.s32.totalorder 0, %v698
        %v700 = vsel %vm699, 0, %v698
        %v701 = vsub.s32 32, %v700
        %v702 = vshll.u32 %v693, %v700
        %v703 = vshrl.u32 %v685, %v701
        %v704 = vor.u32 %v702, %v703
        %v705 = vsub.s32 4294967266, %v700
        %v706 = vadd.s32 %v705, 127
        %v707 = vshll.u32 %v706, 23
        %v708 = vor.u32 4788187, %v707
        %v709 = vand.u32 2147483647, %v708
        %v711 = vcvt.s32.f32 %v704
        %v712 = vmul.f32 %v711, %v709
        %v713 = vxor.u32 %v712, 2147483648
        %v714 = vsel %vm593, %v713, %v712
        %v715 = vsub.s32 4, %v691
        %v716 = vsel %vm593, %v715, %v691
        %v717 = vsel %vm592, %v575, %v714
        %v718 = vsel %vm592, 0, %v716
        %v719 = vmul.f32 %v717, %v717
        %v720 = vmul.f32 %v719, -0.001358992
        %v721 = vadd.f32 %v720, 0.041655596
        %v722 = vmul.f32 %v719, %v721
        %v723 = vadd.f32 %v722, -0.4999988
        %v724 = vmul.f32 %v719, %v723
        %v725 = vadd.f32 1.0, %v724
        %v726 = vmul.f32 %v717, %v717
        %v727 = vmul.f32 %v726, -0.00019511016
        %v728 = vadd.f32 %v727, 0.008332121
        %v729 = vmul.f32 %v726, %v728
        %v730 = vadd.f32 %v729, -0.16666654
        %v731 = vmul.f32 %v726, %v730
        %v732 = vadd.f32 %v731, 1.0
        %v733 = vmul.f32 %v732, %v717
        %vm734 = vweird.f32 %v575
        %v735 = vadd.s32 %v718, 3
        %v736 = vand.u32 %v735, 3
        %vm737 = vcmp.lt.s32.totalorder %v736, 2
        %vm738 = vcmp.eq.s32.totalorder %v736, 0
        %v739 = vxor.u32 %v733, 2147483648
        %v740 = vsel %vm738, %v725, %v739
        %vm741 = vcmp.eq.s32.totalorder %v736, 2
        %v742 = vxor.u32 %v725, 2147483648
        %v743 = vsel %vm741, %v742, %v733
        %v744 = vsel %vm737, %v740, %v743
        %v745 = vsel %vm734, nan, %v744
        %v746 = vand.u32 2147483647, %v576
        %vm747 = vcmp.le.f32.partialorder %v746, 0.7853982
        %vm748 = vcmp.lt.s32.totalorder %v576, 0
        %v749 = vand.u32 %v576, 2139095040
        %v750 = vshrl.u32 %v749, 23
        %v751 = vsub.s32 %v750, 127
        %v752 = vand.u32 2147483647, %v576
        %v753 = vand.u32 %v752, 8388607
        %v754 = vor.u32 %v753, 8388608
        %v755 = vsub.s32 0, %v754
        %v756 = vadd.s32 %v751, 1
        %vm757 = vcmp.gt.s32.totalorder %v756, 0
        %v758 = vsel %vm757, %v756, 0
        %v759 = vshrl.u32 %v758, 5
        %v760 = vand.u32 %v758, 31
        %v761 = vsub.s32 32, %v760
        %v762 = vshrl.u32 683565275, %v761
        %v763 = vshll.u32 683565275, %v760
        %v764 = vshrl.u32 2475754826, %v761
        %v765 = vor.u32 %v763, %v764
        %v766 = vshll.u32 2475754826, %v760
        %v767 = vshrl.u32 2131351028, %v761
        %v768 = vor.u32 %v766, %v767
        %v769 = vshll.u32 2131351028, %v760
        %v770 = vshrl.u32 2102212464, %v761
        %v771 = vor.u32 %v769, %v770
        %v772 = vshll.u32 2102212464, %v760
        %v773 = vshrl.u32 920167782, %v761
        %v774 = vor.u32 %v772, %v773
        %v775 = vshll.u32 920167782, %v760
        %v776 = vshrl.u32 1326507024, %v761
        %v777 = vor.u32 %v775, %v776
        %vm778 = vcmp.lt.s32.totalorder %v759, 1
        %vm779 = vcmp.lt.s32.totalorder %v759, 2
        %vm780 = vcmp.lt.s32.totalorder %v759, 3
        %vm781 = vcmp.lt.s32.totalorder %v759, 4
        %v782 = vsel %vm778, %v762, %v765
        %v783 = vsel %vm781, %v771, 2102212464
        %v784 = vsel %vm780, %v768, %v783
        %v785 = vsel %vm779, %v782, %v784
        %v786 = vsel %vm778, %v765, %v768
        %v787 = vsel %vm781, %v774, 920167782
        %v788 = vsel %vm780, %v771, %v787
        %v789 = vsel %vm779, %v786, %v788
        %v790 = vsel %vm778, %v768, %v771
        %v791 = vsel %vm781, %v777, 1326507024
        %v792 = vsel %vm780, %v774, %v791
        %v793 = vsel %vm779, %v790, %v792
        %v794 = vshll.u32 %v754, 8
        %v795 = vand.u32 %v794, 65535
        %v796 = vshrl.u32 %v794, 16
        %v797 = vand.u32 %v793, 65535
        %v798 = vshrl.u32 %v793, 16
        %v799 = vmul.u32 %v795, %v797
        %v800 = vmul.u32 %v795, %v798
        %v801 = vmul.u32 %v796, %v797
        %v802 = vmul.u32 %v796, %v798
        %v803 = vshll.u32 %v800, 16
        %v804 = vshrl.u32 %v800, 16
        %v805 = vshll.u32 %v801, 16
        %v806 = vshrl.u32 %v801, 16
        %vm807 = vc.u32 %v799, %v803
        %v808 = vsel %vm807, 1, 0
        %v809 = vadd.s32 %v799, %v803
        %v810 = vadd.s32 %v802, %v808
        %vm811 = vc.u32 %v809, %v805
        %v812 = vsel %vm811, 1, 0
        %v813 = vadd.s32 %v809, %v805
        %v814 = vadd.s32 %v810, %v812
        %v815 = vadd.s32 %v814, %v804
        %v816 = vadd.s32 %v815, %v806
        %v817 = vand.u32 %v794, 65535
        %v818 = vshrl.u32 %v794, 16
        %v819 = vand.u32 %v789, 65535
        %v820 = vshrl.u32 %v789, 16
        %v821 = vmul.u32 %v817, %v819
        %v822 = vmul.u32 %v817, %v820
        %v823 = vmul.u32 %v818, %v819
        %v824 = vmul.u32 %v818, %v820
        %v825 = vshll.u32 %v822, 16
        %v826 = vshrl.u32 %v822, 16
        %v827 = vshll.u32 %v823, 16
        %v828 = vshrl.u32 %v823, 16
        %vm829 = vc.u32 %v821, %v825
        %v830 = vsel %vm829, 1, 0
        %v831 = vadd.s32 %v821, %v825
        %v832 = vadd.s32 %v824, %v830
        %vm833 = vc.u32 %v831, %v827
        %v834 = vsel %vm833, 1, 0
        %v835 = vadd.s32 %v831, %v827
        %v836 = vadd.s32 %v832, %v834
        %v837 = vadd.s32 %v836, %v826
        %v838 = vadd.s32 %v837, %v828
        %v839 = vmul.u32 %v794, %v785
        %v840 = vadd.s32 %v816, %v835
        %vm841 = vc.u32 %v816, %v835
        %v842 = vadd.s32 %v838, 1
        %v843 = vsel %vm841, %v842, %v838
        %v844 = vadd.s32 %v839, %v843
        %v845 = vadd.s32 %v844, 536870912
        %v846 = vshrl.u32 %v845, 30
        %v847 = vshll.u32 %v846, 30
        %v848 = vsub.s32 %v844, %v847
        %vm849 = vcmp.lt.s32.totalorder %v848, 0
        %v850 = vsub.s32 0, %v848
        %v851 = vsel %vm849, %v850, %v848
        %v852 = vclz %v851
        %v853 = vsub.s32 %v852, 2
        %vm854 = vcmp.gt.s32.totalorder 0, %v853
        %v855 = vsel %vm854, 0, %v853
        %v856 = vsub.s32 32, %v855
        %v857 = vshll.u32 %v848, %v855
        %v858 = vshrl.u32 %v840, %v856
        %v859 = vor.u32 %v857, %v858
        %v860 = vsub.s32 4294967266, %v855
        %v861 = vadd.s32 %v860, 127
        %v862 = vshll.u32 %v861, 23
        %v863 = vor.u32 4788187, %v862
        %v864 = vand.u32 2147483647, %v863
        %v866 = vcvt.s32.f32 %v859
        %v867 = vmul.f32 %v866, %v864
        %v868 = vxor.u32 %v867, 2147483648
        %v869 = vsel %vm748, %v868, %v867
        %v870 = vsub.s32 4, %v846
        %v871 = vsel %vm748, %v870, %v846
        %v872 = vsel %vm747, %v576, %v869
        %v873 = vsel %vm747, 0, %v871
        %v874 = vmul.f32 %v872, %v872
        %v875 = vmul.f32 %v874, -0.001358992
        %v876 = vadd.f32 %v875, 0.041655596
        %v877 = vmul.f32 %v874, %v876
        %v878 = vadd.f32 %v877, -0.4999988
        %v879 = vmul.f32 %v874, %v878
        %v880 = vadd.f32 1.0, %v879
        %v881 = vmul.f32 %v872, %v872
        %v882 = vmul.f32 %v881, -0.00019511016
        %v883 = vadd.f32 %v882, 0.008332121
        %v884 = vmul.f32 %v881, %v883
        %v885 = vadd.f32 %v884, -0.16666654
        %v886 = vmul.f32 %v881, %v885
        %v887 = vadd.f32 %v886, 1.0
        %v888 = vmul.f32 %v887, %v872
        %vm889 = vweird.f32 %v576
        %v890 = vadd.s32 %v873, 3
        %v891 = vand.u32 %v890, 3
        %vm892 = vcmp.lt.s32.totalorder %v891, 2
        %vm893 = vcmp.eq.s32.totalorder %v891, 0
        %v894 = vxor.u32 %v888, 2147483648
        %v895 = vsel %vm893, %v880, %v894
        %vm896 = vcmp.eq.s32.totalorder %v891, 2
        %v897 = vxor.u32 %v880, 2147483648
        %v898 = vsel %vm896, %v897, %v888
        %v899 = vsel %vm892, %v895, %v898
        %v900 = vsel %vm889, nan, %v899
        %v901 = vand.u32 2147483647, %v577
        %vm902 = vcmp.le.f32.partialorder %v901, 0.7853982
        %vm903 = vcmp.lt.s32.totalorder %v577, 0
        %v904 = vand.u32 %v577, 2139095040
        %v905 = vshrl.u32 %v904, 23
        %v906 = vsub.s32 %v905, 127
        %v907 = vand.u32 2147483647, %v577
        %v908 = vand.u32 %v907, 8388607
        %v909 = vor.u32 %v908, 8388608
        %v910 = vsub.s32 0, %v909
        %v911 = vadd.s32 %v906, 1
        %vm912 = vcmp.gt.s32.totalorder %v911, 0
        %v913 = vsel %vm912, %v911, 0
        %v914 = vshrl.u32 %v913, 5
        %v915 = vand.u32 %v913, 31
        %v916 = vsub.s32 32, %v915
        %v917 = vshrl.u32 683565275, %v916
        %v918 = vshll.u32 683565275, %v915
        %v919 = vshrl.u32 2475754826, %v916
        %v920 = vor.u32 %v918, %v919
        %v921 = vshll.u32 2475754826, %v915
        %v922 = vshrl.u32 2131351028, %v916
        %v923 = vor.u32 %v921, %v922
        %v924 = vshll.u32 2131351028, %v915
        %v925 = vshrl.u32 2102212464, %v916
        %v926 = vor.u32 %v924, %v925
        %v927 = vshll.u32 2102212464, %v915
        %v928 = vshrl.u32 920167782, %v916
        %v929 = vor.u32 %v927, %v928
        %v930 = vshll.u32 920167782, %v915
        %v931 = vshrl.u32 1326507024, %v916
        %v932 = vor.u32 %v930, %v931
        %vm933 = vcmp.lt.s32.totalorder %v914, 1
        %vm934 = vcmp.lt.s32.totalorder %v914, 2
        %vm935 = vcmp.lt.s32.totalorder %v914, 3
        %vm936 = vcmp.lt.s32.totalorder %v914, 4
        %v937 = vsel %vm933, %v917, %v920
        %v938 = vsel %vm936, %v926, 2102212464
        %v939 = vsel %vm935, %v923, %v938
        %v940 = vsel %vm934, %v937, %v939
        %v941 = vsel %vm933, %v920, %v923
        %v942 = vsel %vm936, %v929, 920167782
        %v943 = vsel %vm935, %v926, %v942
        %v944 = vsel %vm934, %v941, %v943
        %v945 = vsel %vm933, %v923, %v926
        %v946 = vsel %vm936, %v932, 1326507024
        %v947 = vsel %vm935, %v929, %v946
        %v948 = vsel %vm934, %v945, %v947
        %v949 = vshll.u32 %v909, 8
        %v950 = vand.u32 %v949, 65535
        %v951 = vshrl.u32 %v949, 16
        %v952 = vand.u32 %v948, 65535
        %v953 = vshrl.u32 %v948, 16
        %v954 = vmul.u32 %v950, %v952
        %v955 = vmul.u32 %v950, %v953
        %v956 = vmul.u32 %v951, %v952
        %v957 = vmul.u32 %v951, %v953
        %v958 = vshll.u32 %v955, 16
        %v959 = vshrl.u32 %v955, 16
        %v960 = vshll.u32 %v956, 16
        %v961 = vshrl.u32 %v956, 16
        %vm962 = vc.u32 %v954, %v958
        %v963 = vsel %vm962, 1, 0
        %v964 = vadd.s32 %v954, %v958
        %v965 = vadd.s32 %v957, %v963
        %vm966 = vc.u32 %v964, %v960
        %v967 = vsel %vm966, 1, 0
        %v968 = vadd.s32 %v964, %v960
        %v969 = vadd.s32 %v965, %v967
        %v970 = vadd.s32 %v969, %v959
        %v971 = vadd.s32 %v970, %v961
        %v972 = vand.u32 %v949, 65535
        %v973 = vshrl.u32 %v949, 16
        %v974 = vand.u32 %v944, 65535
        %v975 = vshrl.u32 %v944, 16
        %v976 = vmul.u32 %v972, %v974
        %v977 = vmul.u32 %v972, %v975
        %v978 = vmul.u32 %v973, %v974
        %v979 = vmul.u32 %v973, %v975
        %v980 = vshll.u32 %v977, 16
        %v981 = vshrl.u32 %v977, 16
        %v982 = vshll.u32 %v978, 16
        %v983 = vshrl.u32 %v978, 16
        %vm984 = vc.u32 %v976, %v980
        %v985 = vsel %vm984, 1, 0
        %v986 = vadd.s32 %v976, %v980
        %v987 = vadd.s32 %v979, %v985
        %vm988 = vc.u32 %v986, %v982
        %v989 = vsel %vm988, 1, 0
        %v990 = vadd.s32 %v986, %v982
        %v991 = vadd.s32 %v987, %v989
        %v992 = vadd.s32 %v991, %v981
        %v993 = vadd.s32 %v992, %v983
        %v994 = vmul.u32 %v949, %v940
        %v995 = vadd.s32 %v971, %v990
        %vm996 = vc.u32 %v971, %v990
        %v997 = vadd.s32 %v993, 1
        %v998 = vsel %vm996, %v997, %v993
        %v999 = vadd.s32 %v994, %v998
        %v1000 = vadd.s32 %v999, 536870912
        %v1001 = vshrl.u32 %v1000, 30
        %v1002 = vshll.u32 %v1001, 30
        %v1003 = vsub.s32 %v999, %v1002
        %vm1004 = vcmp.lt.s32.totalorder %v1003, 0
        %v1005 = vsub.s32 0, %v1003
        %v1006 = vsel %vm1004, %v1005, %v1003
        %v1007 = vclz %v1006
        %v1008 = vsub.s32 %v1007, 2
        %vm1009 = vcmp.gt.s32.totalorder 0, %v1008
        %v1010 = vsel %vm1009, 0, %v1008
        %v1011 = vsub.s32 32, %v1010
        %v1012 = vshll.u32 %v1003, %v1010
        %v1013 = vshrl.u32 %v995, %v1011
        %v1014 = vor.u32 %v1012, %v1013
        %v1015 = vsub.s32 4294967266, %v1010
        %v1016 = vadd.s32 %v1015, 127
        %v1017 = vshll.u32 %v1016, 23
        %v1018 = vor.u32 4788187, %v1017
        %v1019 = vand.u32 2147483647, %v1018
        %v1021 = vcvt.s32.f32 %v1014
        %v1022 = vmul.f32 %v1021, %v1019
        %v1023 = vxor.u32 %v1022, 2147483648
        %v1024 = vsel %vm903, %v1023, %v1022
        %v1025 = vsub.s32 4, %v1001
        %v1026 = vsel %vm903, %v1025, %v1001
        %v1027 = vsel %vm902, %v577, %v1024
        %v1028 = vsel %vm902, 0, %v1026
        %v1029 = vmul.f32 %v1027, %v1027
        %v1030 = vmul.f32 %v1029, -0.001358992
        %v1031 = vadd.f32 %v1030, 0.041655596
        %v1032 = vmul.f32 %v1029, %v1031
        %v1033 = vadd.f32 %v1032, -0.4999988
        %v1034 = vmul.f32 %v1029, %v1033
        %v1035 = vadd.f32 1.0, %v1034
        %v1036 = vmul.f32 %v1027, %v1027
        %v1037 = vmul.f32 %v1036, -0.00019511016
        %v1038 = vadd.f32 %v1037, 0.008332121
        %v1039 = vmul.f32 %v1036, %v1038
        %v1040 = vadd.f32 %v1039, -0.16666654
        %v1041 = vmul.f32 %v1036, %v1040
        %v1042 = vadd.f32 %v1041, 1.0
        %v1043 = vmul.f32 %v1042, %v1027
        %vm1044 = vweird.f32 %v577
        %v1045 = vadd.s32 %v1028, 3
        %v1046 = vand.u32 %v1045, 3
        %vm1047 = vcmp.lt.s32.totalorder %v1046, 2
        %vm1048 = vcmp.eq.s32.totalorder %v1046, 0
        %v1049 = vxor.u32 %v1043, 2147483648
        %v1050 = vsel %vm1048, %v1035, %v1049
        %vm1051 = vcmp.eq.s32.totalorder %v1046, 2
        %v1052 = vxor.u32 %v1035, 2147483648
        %v1053 = vsel %vm1051, %v1052, %v1043
        %v1054 = vsel %vm1047, %v1050, %v1053
        %v1055 = vsel %vm1044, nan, %v1054
        %v1056 = vand.u32 2147483647, %v578
        %vm1057 = vcmp.le.f32.partialorder %v1056, 0.7853982
        %vm1058 = vcmp.lt.s32.totalorder %v578, 0
        %v1059 = vand.u32 %v578, 2139095040
        %v1060 = vshrl.u32 %v1059, 23
        %v1061 = vsub.s32 %v1060, 127
        %v1062 = vand.u32 2147483647, %v578
        %v1063 = vand.u32 %v1062, 8388607
        %v1064 = vor.u32 %v1063, 8388608
        %v1065 = vsub.s32 0, %v1064
        %v1066 = vadd.s32 %v1061, 1
        %vm1067 = vcmp.gt.s32.totalorder %v1066, 0
        %v1068 = vsel %vm1067, %v1066, 0
        %v1069 = vshrl.u32 %v1068, 5
        %v1070 = vand.u32 %v1068, 31
        %v1071 = vsub.s32 32, %v1070
        %v1072 = vshrl.u32 683565275, %v1071
        %v1073 = vshll.u32 683565275, %v1070
        %v1074 = vshrl.u32 2475754826, %v1071
        %v1075 = vor.u32 %v1073, %v1074
        %v1076 = vshll.u32 2475754826, %v1070
        %v1077 = vshrl.u32 2131351028, %v1071
        %v1078 = vor.u32 %v1076, %v1077
        %v1079 = vshll.u32 2131351028, %v1070
        %v1080 = vshrl.u32 2102212464, %v1071
        %v1081 = vor.u32 %v1079, %v1080
        %v1082 = vshll.u32 2102212464, %v1070
        %v1083 = vshrl.u32 920167782, %v1071
        %v1084 = vor.u32 %v1082, %v1083
        %v1085 = vshll.u32 920167782, %v1070
        %v1086 = vshrl.u32 1326507024, %v1071
        %v1087 = vor.u32 %v1085, %v1086
        %vm1088 = vcmp.lt.s32.totalorder %v1069, 1
        %vm1089 = vcmp.lt.s32.totalorder %v1069, 2
        %vm1090 = vcmp.lt.s32.totalorder %v1069, 3
        %vm1091 = vcmp.lt.s32.totalorder %v1069, 4
        %v1092 = vsel %vm1088, %v1072, %v1075
        %v1093 = vsel %vm1091, %v1081, 2102212464
        %v1094 = vsel %vm1090, %v1078, %v1093
        %v1095 = vsel %vm1089, %v1092, %v1094
        %v1096 = vsel %vm1088, %v1075, %v1078
        %v1097 = vsel %vm1091, %v1084, 920167782
        %v1098 = vsel %vm1090, %v1081, %v1097
        %v1099 = vsel %vm1089, %v1096, %v1098
        %v1100 = vsel %vm1088, %v1078, %v1081
        %v1101 = vsel %vm1091, %v1087, 1326507024
        %v1102 = vsel %vm1090, %v1084, %v1101
        %v1103 = vsel %vm1089, %v1100, %v1102
        %v1104 = vshll.u32 %v1064, 8
        %v1105 = vand.u32 %v1104, 65535
        %v1106 = vshrl.u32 %v1104, 16
        %v1107 = vand.u32 %v1103, 65535
        %v1108 = vshrl.u32 %v1103, 16
        %v1109 = vmul.u32 %v1105, %v1107
        %v1110 = vmul.u32 %v1105, %v1108
        %v1111 = vmul.u32 %v1106, %v1107
        %v1112 = vmul.u32 %v1106, %v1108
        %v1113 = vshll.u32 %v1110, 16
        %v1114 = vshrl.u32 %v1110, 16
        %v1115 = vshll.u32 %v1111, 16
        %v1116 = vshrl.u32 %v1111, 16
        %vm1117 = vc.u32 %v1109, %v1113
        %v1118 = vsel %vm1117, 1, 0
        %v1119 = vadd.s32 %v1109, %v1113
        %v1120 = vadd.s32 %v1112, %v1118
        %vm1121 = vc.u32 %v1119, %v1115
        %v1122 = vsel %vm1121, 1, 0
        %v1123 = vadd.s32 %v1119, %v1115
        %v1124 = vadd.s32 %v1120, %v1122
        %v1125 = vadd.s32 %v1124, %v1114
        %v1126 = vadd.s32 %v1125, %v1116
        %v1127 = vand.u32 %v1104, 65535
        %v1128 = vshrl.u32 %v1104, 16
        %v1129 = vand.u32 %v1099, 65535
        %v1130 = vshrl.u32 %v1099, 16
        %v1131 = vmul.u32 %v1127, %v1129
        %v1132 = vmul.u32 %v1127, %v1130
        %v1133 = vmul.u32 %v1128, %v1129
        %v1134 = vmul.u32 %v1128, %v1130
        %v1135 = vshll.u32 %v1132, 16
        %v1136 = vshrl.u32 %v1132, 16
        %v1137 = vshll.u32 %v1133, 16
        %v1138 = vshrl.u32 %v1133, 16
        %vm1139 = vc.u32 %v1131, %v1135
        %v1140 = vsel %vm1139, 1, 0
        %v1141 = vadd.s32 %v1131, %v1135
        %v1142 = vadd.s32 %v1134, %v1140
        %vm1143 = vc.u32 %v1141, %v1137
        %v1144 = vsel %vm1143, 1, 0
        %v1145 = vadd.s32 %v1141, %v1137
        %v1146 = vadd.s32 %v1142, %v1144
        %v1147 = vadd.s32 %v1146, %v1136
        %v1148 = vadd.s32 %v1147, %v1138
        %v1149 = vmul.u32 %v1104, %v1095
        %v1150 = vadd.s32 %v1126, %v1145
        %vm1151 = vc.u32 %v1126, %v1145
        %v1152 = vadd.s32 %v1148, 1
        %v1153 = vsel %vm1151, %v1152, %v1148
        %v1154 = vadd.s32 %v1149, %v1153
        %v1155 = vadd.s32 %v1154, 536870912
        %v1156 = vshrl.u32 %v1155, 30
        %v1157 = vshll.u32 %v1156, 30
        %v1158 = vsub.s32 %v1154, %v1157
        %vm1159 = vcmp.lt.s32.totalorder %v1158, 0
        %v1160 = vsub.s32 0, %v1158
        %v1161 = vsel %vm1159, %v1160, %v1158
        %v1162 = vclz %v1161
        %v1163 = vsub.s32 %v1162, 2
        %vm1164 = vcmp.gt.s32.totalorder 0, %v1163
        %v1165 = vsel %vm1164, 0, %v1163
        %v1166 = vsub.s32 32, %v1165
        %v1167 = vshll.u32 %v1158, %v1165
        %v1168 = vshrl.u32 %v1150, %v1166
        %v1169 = vor.u32 %v1167, %v1168
        %v1170 = vsub.s32 4294967266, %v1165
        %v1171 = vadd.s32 %v1170, 127
        %v1172 = vshll.u32 %v1171, 23
        %v1173 = vor.u32 4788187, %v1172
        %v1174 = vand.u32 2147483647, %v1173
        %v1176 = vcvt.s32.f32 %v1169
        %v1177 = vmul.f32 %v1176, %v1174
        %v1178 = vxor.u32 %v1177, 2147483648
        %v1179 = vsel %vm1058, %v1178, %v1177
        %v1180 = vsub.s32 4, %v1156
        %v1181 = vsel %vm1058, %v1180, %v1156
        %v1182 = vsel %vm1057, %v578, %v1179
        %v1183 = vsel %vm1057, 0, %v1181
        %v1184 = vmul.f32 %v1182, %v1182
        %v1185 = vmul.f32 %v1184, -0.001358992
        %v1186 = vadd.f32 %v1185, 0.041655596
        %v1187 = vmul.f32 %v1184, %v1186
        %v1188 = vadd.f32 %v1187, -0.4999988
        %v1189 = vmul.f32 %v1184, %v1188
        %v1190 = vadd.f32 1.0, %v1189
        %v1191 = vmul.f32 %v1182, %v1182
        %v1192 = vmul.f32 %v1191, -0.00019511016
        %v1193 = vadd.f32 %v1192, 0.008332121
        %v1194 = vmul.f32 %v1191, %v1193
        %v1195 = vadd.f32 %v1194, -0.16666654
        %v1196 = vmul.f32 %v1191, %v1195
        %v1197 = vadd.f32 %v1196, 1.0
        %v1198 = vmul.f32 %v1197, %v1182
        %vm1199 = vweird.f32 %v578
        %v1200 = vadd.s32 %v1183, 3
        %v1201 = vand.u32 %v1200, 3
        %vm1202 = vcmp.lt.s32.totalorder %v1201, 2
        %vm1203 = vcmp.eq.s32.totalorder %v1201, 0
        %v1204 = vxor.u32 %v1198, 2147483648
        %v1205 = vsel %vm1203, %v1190, %v1204
        %vm1206 = vcmp.eq.s32.totalorder %v1201, 2
        %v1207 = vxor.u32 %v1190, 2147483648
        %v1208 = vsel %vm1206, %v1207, %v1198
        %v1209 = vsel %vm1202, %v1205, %v1208
        %v1210 = vsel %vm1199, nan, %v1209
        %v1211 = vand.u32 2147483647, %v579
        %vm1212 = vcmp.le.f32.partialorder %v1211, 0.7853982
        %vm1213 = vcmp.lt.s32.totalorder %v579, 0
        %v1214 = vand.u32 %v579, 2139095040
        %v1215 = vshrl.u32 %v1214, 23
        %v1216 = vsub.s32 %v1215, 127
        %v1217 = vand.u32 2147483647, %v579
        %v1218 = vand.u32 %v1217, 8388607
        %v1219 = vor.u32 %v1218, 8388608
        %v1220 = vsub.s32 0, %v1219
        %v1221 = vadd.s32 %v1216, 1
        %vm1222 = vcmp.gt.s32.totalorder %v1221, 0
        %v1223 = vsel %vm1222, %v1221, 0
        %v1224 = vshrl.u32 %v1223, 5
        %v1225 = vand.u32 %v1223, 31
        %v1226 = vsub.s32 32, %v1225
        %v1227 = vshrl.u32 683565275, %v1226
        %v1228 = vshll.u32 683565275, %v1225
        %v1229 = vshrl.u32 2475754826, %v1226
        %v1230 = vor.u32 %v1228, %v1229
        %v1231 = vshll.u32 2475754826, %v1225
        %v1232 = vshrl.u32 2131351028, %v1226
        %v1233 = vor.u32 %v1231, %v1232
        %v1234 = vshll.u32 2131351028, %v1225
        %v1235 = vshrl.u32 2102212464, %v1226
        %v1236 = vor.u32 %v1234, %v1235
        %v1237 = vshll.u32 2102212464, %v1225
        %v1238 = vshrl.u32 920167782, %v1226
        %v1239 = vor.u32 %v1237, %v1238
        %v1240 = vshll.u32 920167782, %v1225
        %v1241 = vshrl.u32 1326507024, %v1226
        %v1242 = vor.u32 %v1240, %v1241
        %vm1243 = vcmp.lt.s32.totalorder %v1224, 1
        %vm1244 = vcmp.lt.s32.totalorder %v1224, 2
        %vm1245 = vcmp.lt.s32.totalorder %v1224, 3
        %vm1246 = vcmp.lt.s32.totalorder %v1224, 4
        %v1247 = vsel %vm1243, %v1227, %v1230
        %v1248 = vsel %vm1246, %v1236, 2102212464
        %v1249 = vsel %vm1245, %v1233, %v1248
        %v1250 = vsel %vm1244, %v1247, %v1249
        %v1251 = vsel %vm1243, %v1230, %v1233
        %v1252 = vsel %vm1246, %v1239, 920167782
        %v1253 = vsel %vm1245, %v1236, %v1252
        %v1254 = vsel %vm1244, %v1251, %v1253
        %v1255 = vsel %vm1243, %v1233, %v1236
        %v1256 = vsel %vm1246, %v1242, 1326507024
        %v1257 = vsel %vm1245, %v1239, %v1256
        %v1258 = vsel %vm1244, %v1255, %v1257
        %v1259 = vshll.u32 %v1219, 8
        %v1260 = vand.u32 %v1259, 65535
        %v1261 = vshrl.u32 %v1259, 16
        %v1262 = vand.u32 %v1258, 65535
        %v1263 = vshrl.u32 %v1258, 16
        %v1264 = vmul.u32 %v1260, %v1262
        %v1265 = vmul.u32 %v1260, %v1263
        %v1266 = vmul.u32 %v1261, %v1262
        %v1267 = vmul.u32 %v1261, %v1263
        %v1268 = vshll.u32 %v1265, 16
        %v1269 = vshrl.u32 %v1265, 16
        %v1270 = vshll.u32 %v1266, 16
        %v1271 = vshrl.u32 %v1266, 16
        %vm1272 = vc.u32 %v1264, %v1268
        %v1273 = vsel %vm1272, 1, 0
        %v1274 = vadd.s32 %v1264, %v1268
        %v1275 = vadd.s32 %v1267, %v1273
        %vm1276 = vc.u32 %v1274, %v1270
        %v1277 = vsel %vm1276, 1, 0
        %v1278 = vadd.s32 %v1274, %v1270
        %v1279 = vadd.s32 %v1275, %v1277
        %v1280 = vadd.s32 %v1279, %v1269
        %v1281 = vadd.s32 %v1280, %v1271
        %v1282 = vand.u32 %v1259, 65535
        %v1283 = vshrl.u32 %v1259, 16
        %v1284 = vand.u32 %v1254, 65535
        %v1285 = vshrl.u32 %v1254, 16
        %v1286 = vmul.u32 %v1282, %v1284
        %v1287 = vmul.u32 %v1282, %v1285
        %v1288 = vmul.u32 %v1283, %v1284
        %v1289 = vmul.u32 %v1283, %v1285
        %v1290 = vshll.u32 %v1287, 16
        %v1291 = vshrl.u32 %v1287, 16
        %v1292 = vshll.u32 %v1288, 16
        %v1293 = vshrl.u32 %v1288, 16
        %vm1294 = vc.u32 %v1286, %v1290
        %v1295 = vsel %vm1294, 1, 0
        %v1296 = vadd.s32 %v1286, %v1290
        %v1297 = vadd.s32 %v1289, %v1295
        %vm1298 = vc.u32 %v1296, %v1292
        %v1299 = vsel %vm1298, 1, 0
        %v1300 = vadd.s32 %v1296, %v1292
        %v1301 = vadd.s32 %v1297, %v1299
        %v1302 = vadd.s32 %v1301, %v1291
        %v1303 = vadd.s32 %v1302, %v1293
        %v1304 = vmul.u32 %v1259, %v1250
        %v1305 = vadd.s32 %v1281, %v1300
        %vm1306 = vc.u32 %v1281, %v1300
        %v1307 = vadd.s32 %v1303, 1
        %v1308 = vsel %vm1306, %v1307, %v1303
        %v1309 = vadd.s32 %v1304, %v1308
        %v1310 = vadd.s32 %v1309, 536870912
        %v1311 = vshrl.u32 %v1310, 30
        %v1312 = vshll.u32 %v1311, 30
        %v1313 = vsub.s32 %v1309, %v1312
        %vm1314 = vcmp.lt.s32.totalorder %v1313, 0
        %v1315 = vsub.s32 0, %v1313
        %v1316 = vsel %vm1314, %v1315, %v1313
        %v1317 = vclz %v1316
        %v1318 = vsub.s32 %v1317, 2
        %vm1319 = vcmp.gt.s32.totalorder 0, %v1318
        %v1320 = vsel %vm1319, 0, %v1318
        %v1321 = vsub.s32 32, %v1320
        %v1322 = vshll.u32 %v1313, %v1320
        %v1323 = vshrl.u32 %v1305, %v1321
        %v1324 = vor.u32 %v1322, %v1323
        %v1325 = vsub.s32 4294967266, %v1320
        %v1326 = vadd.s32 %v1325, 127
        %v1327 = vshll.u32 %v1326, 23
        %v1328 = vor.u32 4788187, %v1327
        %v1329 = vand.u32 2147483647, %v1328
        %v1331 = vcvt.s32.f32 %v1324
        %v1332 = vmul.f32 %v1331, %v1329
        %v1333 = vxor.u32 %v1332, 2147483648
        %v1334 = vsel %vm1213, %v1333, %v1332
        %v1335 = vsub.s32 4, %v1311
        %v1336 = vsel %vm1213, %v1335, %v1311
        %v1337 = vsel %vm1212, %v579, %v1334
        %v1338 = vsel %vm1212, 0, %v1336
        %v1339 = vmul.f32 %v1337, %v1337
        %v1340 = vmul.f32 %v1339, -0.001358992
        %v1341 = vadd.f32 %v1340, 0.041655596
        %v1342 = vmul.f32 %v1339, %v1341
        %v1343 = vadd.f32 %v1342, -0.4999988
        %v1344 = vmul.f32 %v1339, %v1343
        %v1345 = vadd.f32 1.0, %v1344
        %v1346 = vmul.f32 %v1337, %v1337
        %v1347 = vmul.f32 %v1346, -0.00019511016
        %v1348 = vadd.f32 %v1347, 0.008332121
        %v1349 = vmul.f32 %v1346, %v1348
        %v1350 = vadd.f32 %v1349, -0.16666654
        %v1351 = vmul.f32 %v1346, %v1350
        %v1352 = vadd.f32 %v1351, 1.0
        %v1353 = vmul.f32 %v1352, %v1337
        %vm1354 = vweird.f32 %v579
        %v1355 = vadd.s32 %v1338, 3
        %v1356 = vand.u32 %v1355, 3
        %vm1357 = vcmp.lt.s32.totalorder %v1356, 2
        %vm1358 = vcmp.eq.s32.totalorder %v1356, 0
        %v1359 = vxor.u32 %v1353, 2147483648
        %v1360 = vsel %vm1358, %v1345, %v1359
        %vm1361 = vcmp.eq.s32.totalorder %v1356, 2
        %v1362 = vxor.u32 %v1345, 2147483648
        %v1363 = vsel %vm1361, %v1362, %v1353
        %v1364 = vsel %vm1357, %v1360, %v1363
        %v1365 = vsel %vm1354, nan, %v1364
        %v1366 = vand.u32 2147483647, %v580
        %vm1367 = vcmp.le.f32.partialorder %v1366, 0.7853982
        %vm1368 = vcmp.lt.s32.totalorder %v580, 0
        %v1369 = vand.u32 %v580, 2139095040
        %v1370 = vshrl.u32 %v1369, 23
        %v1371 = vsub.s32 %v1370, 127
        %v1372 = vand.u32 2147483647, %v580
        %v1373 = vand.u32 %v1372, 8388607
        %v1374 = vor.u32 %v1373, 8388608
        %v1375 = vsub.s32 0, %v1374
        %v1376 = vadd.s32 %v1371, 1
        %vm1377 = vcmp.gt.s32.totalorder %v1376, 0
        %v1378 = vsel %vm1377, %v1376, 0
        %v1379 = vshrl.u32 %v1378, 5
        %v1380 = vand.u32 %v1378, 31
        %v1381 = vsub.s32 32, %v1380
        %v1382 = vshrl.u32 683565275, %v1381
        %v1383 = vshll.u32 683565275, %v1380
        %v1384 = vshrl.u32 2475754826, %v1381
        %v1385 = vor.u32 %v1383, %v1384
        %v1386 = vshll.u32 2475754826, %v1380
        %v1387 = vshrl.u32 2131351028, %v1381
        %v1388 = vor.u32 %v1386, %v1387
        %v1389 = vshll.u32 2131351028, %v1380
        %v1390 = vshrl.u32 2102212464, %v1381
        %v1391 = vor.u32 %v1389, %v1390
        %v1392 = vshll.u32 2102212464, %v1380
        %v1393 = vshrl.u32 920167782, %v1381
        %v1394 = vor.u32 %v1392, %v1393
        %v1395 = vshll.u32 920167782, %v1380
        %v1396 = vshrl.u32 1326507024, %v1381
        %v1397 = vor.u32 %v1395, %v1396
        %vm1398 = vcmp.lt.s32.totalorder %v1379, 1
        %vm1399 = vcmp.lt.s32.totalorder %v1379, 2
        %vm1400 = vcmp.lt.s32.totalorder %v1379, 3
        %vm1401 = vcmp.lt.s32.totalorder %v1379, 4
        %v1402 = vsel %vm1398, %v1382, %v1385
        %v1403 = vsel %vm1401, %v1391, 2102212464
        %v1404 = vsel %vm1400, %v1388, %v1403
        %v1405 = vsel %vm1399, %v1402, %v1404
        %v1406 = vsel %vm1398, %v1385, %v1388
        %v1407 = vsel %vm1401, %v1394, 920167782
        %v1408 = vsel %vm1400, %v1391, %v1407
        %v1409 = vsel %vm1399, %v1406, %v1408
        %v1410 = vsel %vm1398, %v1388, %v1391
        %v1411 = vsel %vm1401, %v1397, 1326507024
        %v1412 = vsel %vm1400, %v1394, %v1411
        %v1413 = vsel %vm1399, %v1410, %v1412
        %v1414 = vshll.u32 %v1374, 8
        %v1415 = vand.u32 %v1414, 65535
        %v1416 = vshrl.u32 %v1414, 16
        %v1417 = vand.u32 %v1413, 65535
        %v1418 = vshrl.u32 %v1413, 16
        %v1419 = vmul.u32 %v1415, %v1417
        %v1420 = vmul.u32 %v1415, %v1418
        %v1421 = vmul.u32 %v1416, %v1417
        %v1422 = vmul.u32 %v1416, %v1418
        %v1423 = vshll.u32 %v1420, 16
        %v1424 = vshrl.u32 %v1420, 16
        %v1425 = vshll.u32 %v1421, 16
        %v1426 = vshrl.u32 %v1421, 16
        %vm1427 = vc.u32 %v1419, %v1423
        %v1428 = vsel %vm1427, 1, 0
        %v1429 = vadd.s32 %v1419, %v1423
        %v1430 = vadd.s32 %v1422, %v1428
        %vm1431 = vc.u32 %v1429, %v1425
        %v1432 = vsel %vm1431, 1, 0
        %v1433 = vadd.s32 %v1429, %v1425
        %v1434 = vadd.s32 %v1430, %v1432
        %v1435 = vadd.s32 %v1434, %v1424
        %v1436 = vadd.s32 %v1435, %v1426
        %v1437 = vand.u32 %v1414, 65535
        %v1438 = vshrl.u32 %v1414, 16
        %v1439 = vand.u32 %v1409, 65535
        %v1440 = vshrl.u32 %v1409, 16
        %v1441 = vmul.u32 %v1437, %v1439
        %v1442 = vmul.u32 %v1437, %v1440
        %v1443 = vmul.u32 %v1438, %v1439
        %v1444 = vmul.u32 %v1438, %v1440
        %v1445 = vshll.u32 %v1442, 16
        %v1446 = vshrl.u32 %v1442, 16
        %v1447 = vshll.u32 %v1443, 16
        %v1448 = vshrl.u32 %v1443, 16
        %vm1449 = vc.u32 %v1441, %v1445
        %v1450 = vsel %vm1449, 1, 0
        %v1451 = vadd.s32 %v1441, %v1445
        %v1452 = vadd.s32 %v1444, %v1450
        %vm1453 = vc.u32 %v1451, %v1447
        %v1454 = vsel %vm1453, 1, 0
        %v1455 = vadd.s32 %v1451, %v1447
        %v1456 = vadd.s32 %v1452, %v1454
        %v1457 = vadd.s32 %v1456, %v1446
        %v1458 = vadd.s32 %v1457, %v1448
        %v1459 = vmul.u32 %v1414, %v1405
        %v1460 = vadd.s32 %v1436, %v1455
        %vm1461 = vc.u32 %v1436, %v1455
        %v1462 = vadd.s32 %v1458, 1
        %v1463 = vsel %vm1461, %v1462, %v1458
        %v1464 = vadd.s32 %v1459, %v1463
        %v1465 = vadd.s32 %v1464, 536870912
        %v1466 = vshrl.u32 %v1465, 30
        %v1467 = vshll.u32 %v1466, 30
        %v1468 = vsub.s32 %v1464, %v1467
        %vm1469 = vcmp.lt.s32.totalorder %v1468, 0
        %v1470 = vsub.s32 0, %v1468
        %v1471 = vsel %vm1469, %v1470, %v1468
        %v1472 = vclz %v1471
        %v1473 = vsub.s32 %v1472, 2
        %vm1474 = vcmp.gt.s32.totalorder 0, %v1473
        %v1475 = vsel %vm1474, 0, %v1473
        %v1476 = vsub.s32 32, %v1475
        %v1477 = vshll.u32 %v1468, %v1475
        %v1478 = vshrl.u32 %v1460, %v1476
        %v1479 = vor.u32 %v1477, %v1478
        %v1480 = vsub.s32 4294967266, %v1475
        %v1481 = vadd.s32 %v1480, 127
        %v1482 = vshll.u32 %v1481, 23
        %v1483 = vor.u32 4788187, %v1482
        %v1484 = vand.u32 2147483647, %v1483
        %v1486 = vcvt.s32.f32 %v1479
        %v1487 = vmul.f32 %v1486, %v1484
        %v1488 = vxor.u32 %v1487, 2147483648
        %v1489 = vsel %vm1368, %v1488, %v1487
        %v1490 = vsub.s32 4, %v1466
        %v1491 = vsel %vm1368, %v1490, %v1466
        %v1492 = vsel %vm1367, %v580, %v1489
        %v1493 = vsel %vm1367, 0, %v1491
        %v1494 = vmul.f32 %v1492, %v1492
        %v1495 = vmul.f32 %v1494, -0.001358992
        %v1496 = vadd.f32 %v1495, 0.041655596
        %v1497 = vmul.f32 %v1494, %v1496
        %v1498 = vadd.f32 %v1497, -0.4999988
        %v1499 = vmul.f32 %v1494, %v1498
        %v1500 = vadd.f32 1.0, %v1499
        %v1501 = vmul.f32 %v1492, %v1492
        %v1502 = vmul.f32 %v1501, -0.00019511016
        %v1503 = vadd.f32 %v1502, 0.008332121
        %v1504 = vmul.f32 %v1501, %v1503
        %v1505 = vadd.f32 %v1504, -0.16666654
        %v1506 = vmul.f32 %v1501, %v1505
        %v1507 = vadd.f32 %v1506, 1.0
        %v1508 = vmul.f32 %v1507, %v1492
        %vm1509 = vweird.f32 %v580
        %v1510 = vadd.s32 %v1493, 3
        %v1511 = vand.u32 %v1510, 3
        %vm1512 = vcmp.lt.s32.totalorder %v1511, 2
        %vm1513 = vcmp.eq.s32.totalorder %v1511, 0
        %v1514 = vxor.u32 %v1508, 2147483648
        %v1515 = vsel %vm1513, %v1500, %v1514
        %vm1516 = vcmp.eq.s32.totalorder %v1511, 2
        %v1517 = vxor.u32 %v1500, 2147483648
        %v1518 = vsel %vm1516, %v1517, %v1508
        %v1519 = vsel %vm1512, %v1515, %v1518
        %v1520 = vsel %vm1509, nan, %v1519
        %v1521 = vand.u32 2147483647, %v581
        %vm1522 = vcmp.le.f32.partialorder %v1521, 0.7853982
        %vm1523 = vcmp.lt.s32.totalorder %v581, 0
        %v1524 = vand.u32 %v581, 2139095040
        %v1525 = vshrl.u32 %v1524, 23
        %v1526 = vsub.s32 %v1525, 127
        %v1527 = vand.u32 2147483647, %v581
        %v1528 = vand.u32 %v1527, 8388607
        %v1529 = vor.u32 %v1528, 8388608
        %v1530 = vsub.s32 0, %v1529
        %v1531 = vadd.s32 %v1526, 1
        %vm1532 = vcmp.gt.s32.totalorder %v1531, 0
        %v1533 = vsel %vm1532, %v1531, 0
        %v1534 = vshrl.u32 %v1533, 5
        %v1535 = vand.u32 %v1533, 31
        %v1536 = vsub.s32 32, %v1535
        %v1537 = vshrl.u32 683565275, %v1536
        %v1538 = vshll.u32 683565275, %v1535
        %v1539 = vshrl.u32 2475754826, %v1536
        %v1540 = vor.u32 %v1538, %v1539
        %v1541 = vshll.u32 2475754826, %v1535
        %v1542 = vshrl.u32 2131351028, %v1536
        %v1543 = vor.u32 %v1541, %v1542
        %v1544 = vshll.u32 2131351028, %v1535
        %v1545 = vshrl.u32 2102212464, %v1536
        %v1546 = vor.u32 %v1544, %v1545
        %v1547 = vshll.u32 2102212464, %v1535
        %v1548 = vshrl.u32 920167782, %v1536
        %v1549 = vor.u32 %v1547, %v1548
        %v1550 = vshll.u32 920167782, %v1535
        %v1551 = vshrl.u32 1326507024, %v1536
        %v1552 = vor.u32 %v1550, %v1551
        %vm1553 = vcmp.lt.s32.totalorder %v1534, 1
        %vm1554 = vcmp.lt.s32.totalorder %v1534, 2
        %vm1555 = vcmp.lt.s32.totalorder %v1534, 3
        %vm1556 = vcmp.lt.s32.totalorder %v1534, 4
        %v1557 = vsel %vm1553, %v1537, %v1540
        %v1558 = vsel %vm1556, %v1546, 2102212464
        %v1559 = vsel %vm1555, %v1543, %v1558
        %v1560 = vsel %vm1554, %v1557, %v1559
        %v1561 = vsel %vm1553, %v1540, %v1543
        %v1562 = vsel %vm1556, %v1549, 920167782
        %v1563 = vsel %vm1555, %v1546, %v1562
        %v1564 = vsel %vm1554, %v1561, %v1563
        %v1565 = vsel %vm1553, %v1543, %v1546
        %v1566 = vsel %vm1556, %v1552, 1326507024
        %v1567 = vsel %vm1555, %v1549, %v1566
        %v1568 = vsel %vm1554, %v1565, %v1567
        %v1569 = vshll.u32 %v1529, 8
        %v1570 = vand.u32 %v1569, 65535
        %v1571 = vshrl.u32 %v1569, 16
        %v1572 = vand.u32 %v1568, 65535
        %v1573 = vshrl.u32 %v1568, 16
        %v1574 = vmul.u32 %v1570, %v1572
        %v1575 = vmul.u32 %v1570, %v1573
        %v1576 = vmul.u32 %v1571, %v1572
        %v1577 = vmul.u32 %v1571, %v1573
        %v1578 = vshll.u32 %v1575, 16
        %v1579 = vshrl.u32 %v1575, 16
        %v1580 = vshll.u32 %v1576, 16
        %v1581 = vshrl.u32 %v1576, 16
        %vm1582 = vc.u32 %v1574, %v1578
        %v1583 = vsel %vm1582, 1, 0
        %v1584 = vadd.s32 %v1574, %v1578
        %v1585 = vadd.s32 %v1577, %v1583
        %vm1586 = vc.u32 %v1584, %v1580
        %v1587 = vsel %vm1586, 1, 0
        %v1588 = vadd.s32 %v1584, %v1580
        %v1589 = vadd.s32 %v1585, %v1587
        %v1590 = vadd.s32 %v1589, %v1579
        %v1591 = vadd.s32 %v1590, %v1581
        %v1592 = vand.u32 %v1569, 65535
        %v1593 = vshrl.u32 %v1569, 16
        %v1594 = vand.u32 %v1564, 65535
        %v1595 = vshrl.u32 %v1564, 16
        %v1596 = vmul.u32 %v1592, %v1594
        %v1597 = vmul.u32 %v1592, %v1595
        %v1598 = vmul.u32 %v1593, %v1594
        %v1599 = vmul.u32 %v1593, %v1595
        %v1600 = vshll.u32 %v1597, 16
        %v1601 = vshrl.u32 %v1597, 16
        %v1602 = vshll.u32 %v1598, 16
        %v1603 = vshrl.u32 %v1598, 16
        %vm1604 = vc.u32 %v1596, %v1600
        %v1605 = vsel %vm1604, 1, 0
        %v1606 = vadd.s32 %v1596, %v1600
        %v1607 = vadd.s32 %v1599, %v1605
        %vm1608 = vc.u32 %v1606, %v1602
        %v1609 = vsel %vm1608, 1, 0
        %v1610 = vadd.s32 %v1606, %v1602
        %v1611 = vadd.s32 %v1607, %v1609
        %v1612 = vadd.s32 %v1611, %v1601
        %v1613 = vadd.s32 %v1612, %v1603
        %v1614 = vmul.u32 %v1569, %v1560
        %v1615 = vadd.s32 %v1591, %v1610
        %vm1616 = vc.u32 %v1591, %v1610
        %v1617 = vadd.s32 %v1613, 1
        %v1618 = vsel %vm1616, %v1617, %v1613
        %v1619 = vadd.s32 %v1614, %v1618
        %v1620 = vadd.s32 %v1619, 536870912
        %v1621 = vshrl.u32 %v1620, 30
        %v1622 = vshll.u32 %v1621, 30
        %v1623 = vsub.s32 %v1619, %v1622
        %vm1624 = vcmp.lt.s32.totalorder %v1623, 0
        %v1625 = vsub.s32 0, %v1623
        %v1626 = vsel %vm1624, %v1625, %v1623
        %v1627 = vclz %v1626
        %v1628 = vsub.s32 %v1627, 2
        %vm1629 = vcmp.gt.s32.totalorder 0, %v1628
        %v1630 = vsel %vm1629, 0, %v1628
        %v1631 = vsub.s32 32, %v1630
        %v1632 = vshll.u32 %v1623, %v1630
        %v1633 = vshrl.u32 %v1615, %v1631
        %v1634 = vor.u32 %v1632, %v1633
        %v1635 = vsub.s32 4294967266, %v1630
        %v1636 = vadd.s32 %v1635, 127
        %v1637 = vshll.u32 %v1636, 23
        %v1638 = vor.u32 4788187, %v1637
        %v1639 = vand.u32 2147483647, %v1638
        %v1641 = vcvt.s32.f32 %v1634
        %v1642 = vmul.f32 %v1641, %v1639
        %v1643 = vxor.u32 %v1642, 2147483648
        %v1644 = vsel %vm1523, %v1643, %v1642
        %v1645 = vsub.s32 4, %v1621
        %v1646 = vsel %vm1523, %v1645, %v1621
        %v1647 = vsel %vm1522, %v581, %v1644
        %v1648 = vsel %vm1522, 0, %v1646
        %v1649 = vmul.f32 %v1647, %v1647
        %v1650 = vmul.f32 %v1649, -0.001358992
        %v1651 = vadd.f32 %v1650, 0.041655596
        %v1652 = vmul.f32 %v1649, %v1651
        %v1653 = vadd.f32 %v1652, -0.4999988
        %v1654 = vmul.f32 %v1649, %v1653
        %v1655 = vadd.f32 1.0, %v1654
        %v1656 = vmul.f32 %v1647, %v1647
        %v1657 = vmul.f32 %v1656, -0.00019511016
        %v1658 = vadd.f32 %v1657, 0.008332121
        %v1659 = vmul.f32 %v1656, %v1658
        %v1660 = vadd.f32 %v1659, -0.16666654
        %v1661 = vmul.f32 %v1656, %v1660
        %v1662 = vadd.f32 %v1661, 1.0
        %v1663 = vmul.f32 %v1662, %v1647
        %vm1664 = vweird.f32 %v581
        %v1665 = vadd.s32 %v1648, 3
        %v1666 = vand.u32 %v1665, 3
        %vm1667 = vcmp.lt.s32.totalorder %v1666, 2
        %vm1668 = vcmp.eq.s32.totalorder %v1666, 0
        %v1669 = vxor.u32 %v1663, 2147483648
        %v1670 = vsel %vm1668, %v1655, %v1669
        %vm1671 = vcmp.eq.s32.totalorder %v1666, 2
        %v1672 = vxor.u32 %v1655, 2147483648
        %v1673 = vsel %vm1671, %v1672, %v1663
        %v1674 = vsel %vm1667, %v1670, %v1673
        %v1675 = vsel %vm1664, nan, %v1674
        %v1676 = vand.u32 2147483647, %v582
        %vm1677 = vcmp.le.f32.partialorder %v1676, 0.7853982
        %vm1678 = vcmp.lt.s32.totalorder %v582, 0
        %v1679 = vand.u32 %v582, 2139095040
        %v1680 = vshrl.u32 %v1679, 23
        %v1681 = vsub.s32 %v1680, 127
        %v1682 = vand.u32 2147483647, %v582
        %v1683 = vand.u32 %v1682, 8388607
        %v1684 = vor.u32 %v1683, 8388608
        %v1685 = vsub.s32 0, %v1684
        %v1686 = vadd.s32 %v1681, 1
        %vm1687 = vcmp.gt.s32.totalorder %v1686, 0
        %v1688 = vsel %vm1687, %v1686, 0
        %v1689 = vshrl.u32 %v1688, 5
        %v1690 = vand.u32 %v1688, 31
        %v1691 = vsub.s32 32, %v1690
        %v1692 = vshrl.u32 683565275, %v1691
        %v1693 = vshll.u32 683565275, %v1690
        %v1694 = vshrl.u32 2475754826, %v1691
        %v1695 = vor.u32 %v1693, %v1694
        %v1696 = vshll.u32 2475754826, %v1690
        %v1697 = vshrl.u32 2131351028, %v1691
        %v1698 = vor.u32 %v1696, %v1697
        %v1699 = vshll.u32 2131351028, %v1690
        %v1700 = vshrl.u32 2102212464, %v1691
        %v1701 = vor.u32 %v1699, %v1700
        %v1702 = vshll.u32 2102212464, %v1690
        %v1703 = vshrl.u32 920167782, %v1691
        %v1704 = vor.u32 %v1702, %v1703
        %v1705 = vshll.u32 920167782, %v1690
        %v1706 = vshrl.u32 1326507024, %v1691
        %v1707 = vor.u32 %v1705, %v1706
        %vm1708 = vcmp.lt.s32.totalorder %v1689, 1
        %vm1709 = vcmp.lt.s32.totalorder %v1689, 2
        %vm1710 = vcmp.lt.s32.totalorder %v1689, 3
        %vm1711 = vcmp.lt.s32.totalorder %v1689, 4
        %v1712 = vsel %vm1708, %v1692, %v1695
        %v1713 = vsel %vm1711, %v1701, 2102212464
        %v1714 = vsel %vm1710, %v1698, %v1713
        %v1715 = vsel %vm1709, %v1712, %v1714
        %v1716 = vsel %vm1708, %v1695, %v1698
        %v1717 = vsel %vm1711, %v1704, 920167782
        %v1718 = vsel %vm1710, %v1701, %v1717
        %v1719 = vsel %vm1709, %v1716, %v1718
        %v1720 = vsel %vm1708, %v1698, %v1701
        %v1721 = vsel %vm1711, %v1707, 1326507024
        %v1722 = vsel %vm1710, %v1704, %v1721
        %v1723 = vsel %vm1709, %v1720, %v1722
        %v1724 = vshll.u32 %v1684, 8
        %v1725 = vand.u32 %v1724, 65535
        %v1726 = vshrl.u32 %v1724, 16
        %v1727 = vand.u32 %v1723, 65535
        %v1728 = vshrl.u32 %v1723, 16
        %v1729 = vmul.u32 %v1725, %v1727
        %v1730 = vmul.u32 %v1725, %v1728
        %v1731 = vmul.u32 %v1726, %v1727
        %v1732 = vmul.u32 %v1726, %v1728
        %v1733 = vshll.u32 %v1730, 16
        %v1734 = vshrl.u32 %v1730, 16
        %v1735 = vshll.u32 %v1731, 16
        %v1736 = vshrl.u32 %v1731, 16
        %vm1737 = vc.u32 %v1729, %v1733
        %v1738 = vsel %vm1737, 1, 0
        %v1739 = vadd.s32 %v1729, %v1733
        %v1740 = vadd.s32 %v1732, %v1738
        %vm1741 = vc.u32 %v1739, %v1735
        %v1742 = vsel %vm1741, 1, 0
        %v1743 = vadd.s32 %v1739, %v1735
        %v1744 = vadd.s32 %v1740, %v1742
        %v1745 = vadd.s32 %v1744, %v1734
        %v1746 = vadd.s32 %v1745, %v1736
        %v1747 = vand.u32 %v1724, 65535
        %v1748 = vshrl.u32 %v1724, 16
        %v1749 = vand.u32 %v1719, 65535
        %v1750 = vshrl.u32 %v1719, 16
        %v1751 = vmul.u32 %v1747, %v1749
        %v1752 = vmul.u32 %v1747, %v1750
        %v1753 = vmul.u32 %v1748, %v1749
        %v1754 = vmul.u32 %v1748, %v1750
        %v1755 = vshll.u32 %v1752, 16
        %v1756 = vshrl.u32 %v1752, 16
        %v1757 = vshll.u32 %v1753, 16
        %v1758 = vshrl.u32 %v1753, 16
        %vm1759 = vc.u32 %v1751, %v1755
        %v1760 = vsel %vm1759, 1, 0
        %v1761 = vadd.s32 %v1751, %v1755
        %v1762 = vadd.s32 %v1754, %v1760
        %vm1763 = vc.u32 %v1761, %v1757
        %v1764 = vsel %vm1763, 1, 0
        %v1765 = vadd.s32 %v1761, %v1757
        %v1766 = vadd.s32 %v1762, %v1764
        %v1767 = vadd.s32 %v1766, %v1756
        %v1768 = vadd.s32 %v1767, %v1758
        %v1769 = vmul.u32 %v1724, %v1715
        %v1770 = vadd.s32 %v1746, %v1765
        %vm1771 = vc.u32 %v1746, %v1765
        %v1772 = vadd.s32 %v1768, 1
        %v1773 = vsel %vm1771, %v1772, %v1768
        %v1774 = vadd.s32 %v1769, %v1773
        %v1775 = vadd.s32 %v1774, 536870912
        %v1776 = vshrl.u32 %v1775, 30
        %v1777 = vshll.u32 %v1776, 30
        %v1778 = vsub.s32 %v1774, %v1777
        %vm1779 = vcmp.lt.s32.totalorder %v1778, 0
        %v1780 = vsub.s32 0, %v1778
        %v1781 = vsel %vm1779, %v1780, %v1778
        %v1782 = vclz %v1781
        %v1783 = vsub.s32 %v1782, 2
        %vm1784 = vcmp.gt.s32.totalorder 0, %v1783
        %v1785 = vsel %vm1784, 0, %v1783
        %v1786 = vsub.s32 32, %v1785
        %v1787 = vshll.u32 %v1778, %v1785
        %v1788 = vshrl.u32 %v1770, %v1786
        %v1789 = vor.u32 %v1787, %v1788
        %v1790 = vsub.s32 4294967266, %v1785
        %v1791 = vadd.s32 %v1790, 127
        %v1792 = vshll.u32 %v1791, 23
        %v1793 = vor.u32 4788187, %v1792
        %v1794 = vand.u32 2147483647, %v1793
        %v1796 = vcvt.s32.f32 %v1789
        %v1797 = vmul.f32 %v1796, %v1794
        %v1798 = vxor.u32 %v1797, 2147483648
        %v1799 = vsel %vm1678, %v1798, %v1797
        %v1800 = vsub.s32 4, %v1776
        %v1801 = vsel %vm1678, %v1800, %v1776
        %v1802 = vsel %vm1677, %v582, %v1799
        %v1803 = vsel %vm1677, 0, %v1801
        %v1804 = vmul.f32 %v1802, %v1802
        %v1805 = vmul.f32 %v1804, -0.001358992
        %v1806 = vadd.f32 %v1805, 0.041655596
        %v1807 = vmul.f32 %v1804, %v1806
        %v1808 = vadd.f32 %v1807, -0.4999988
        %v1809 = vmul.f32 %v1804, %v1808
        %v1810 = vadd.f32 1.0, %v1809
        %v1811 = vmul.f32 %v1802, %v1802
        %v1812 = vmul.f32 %v1811, -0.00019511016
        %v1813 = vadd.f32 %v1812, 0.008332121
        %v1814 = vmul.f32 %v1811, %v1813
        %v1815 = vadd.f32 %v1814, -0.16666654
        %v1816 = vmul.f32 %v1811, %v1815
        %v1817 = vadd.f32 %v1816, 1.0
        %v1818 = vmul.f32 %v1817, %v1802
        %vm1819 = vweird.f32 %v582
        %v1820 = vadd.s32 %v1803, 3
        %v1821 = vand.u32 %v1820, 3
        %vm1822 = vcmp.lt.s32.totalorder %v1821, 2
        %vm1823 = vcmp.eq.s32.totalorder %v1821, 0
        %v1824 = vxor.u32 %v1818, 2147483648
        %v1825 = vsel %vm1823, %v1810, %v1824
        %vm1826 = vcmp.eq.s32.totalorder %v1821, 2
        %v1827 = vxor.u32 %v1810, 2147483648
        %v1828 = vsel %vm1826, %v1827, %v1818
        %v1829 = vsel %vm1822, %v1825, %v1828
        %v1830 = vsel %vm1819, nan, %v1829
        %v1831 = vand.u32 2147483647, %v583
        %vm1832 = vcmp.le.f32.partialorder %v1831, 0.7853982
        %vm1833 = vcmp.lt.s32.totalorder %v583, 0
        %v1834 = vand.u32 %v583, 2139095040
        %v1835 = vshrl.u32 %v1834, 23
        %v1836 = vsub.s32 %v1835, 127
        %v1837 = vand.u32 2147483647, %v583
        %v1838 = vand.u32 %v1837, 8388607
        %v1839 = vor.u32 %v1838, 8388608
        %v1840 = vsub.s32 0, %v1839
        %v1841 = vadd.s32 %v1836, 1
        %vm1842 = vcmp.gt.s32.totalorder %v1841, 0
        %v1843 = vsel %vm1842, %v1841, 0
        %v1844 = vshrl.u32 %v1843, 5
        %v1845 = vand.u32 %v1843, 31
        %v1846 = vsub.s32 32, %v1845
        %v1847 = vshrl.u32 683565275, %v1846
        %v1848 = vshll.u32 683565275, %v1845
        %v1849 = vshrl.u32 2475754826, %v1846
        %v1850 = vor.u32 %v1848, %v1849
        %v1851 = vshll.u32 2475754826, %v1845
        %v1852 = vshrl.u32 2131351028, %v1846
        %v1853 = vor.u32 %v1851, %v1852
        %v1854 = vshll.u32 2131351028, %v1845
        %v1855 = vshrl.u32 2102212464, %v1846
        %v1856 = vor.u32 %v1854, %v1855
        %v1857 = vshll.u32 2102212464, %v1845
        %v1858 = vshrl.u32 920167782, %v1846
        %v1859 = vor.u32 %v1857, %v1858
        %v1860 = vshll.u32 920167782, %v1845
        %v1861 = vshrl.u32 1326507024, %v1846
        %v1862 = vor.u32 %v1860, %v1861
        %vm1863 = vcmp.lt.s32.totalorder %v1844, 1
        %vm1864 = vcmp.lt.s32.totalorder %v1844, 2
        %vm1865 = vcmp.lt.s32.totalorder %v1844, 3
        %vm1866 = vcmp.lt.s32.totalorder %v1844, 4
        %v1867 = vsel %vm1863, %v1847, %v1850
        %v1868 = vsel %vm1866, %v1856, 2102212464
        %v1869 = vsel %vm1865, %v1853, %v1868
        %v1870 = vsel %vm1864, %v1867, %v1869
        %v1871 = vsel %vm1863, %v1850, %v1853
        %v1872 = vsel %vm1866, %v1859, 920167782
        %v1873 = vsel %vm1865, %v1856, %v1872
        %v1874 = vsel %vm1864, %v1871, %v1873
        %v1875 = vsel %vm1863, %v1853, %v1856
        %v1876 = vsel %vm1866, %v1862, 1326507024
        %v1877 = vsel %vm1865, %v1859, %v1876
        %v1878 = vsel %vm1864, %v1875, %v1877
        %v1879 = vshll.u32 %v1839, 8
        %v1880 = vand.u32 %v1879, 65535
        %v1881 = vshrl.u32 %v1879, 16
        %v1882 = vand.u32 %v1878, 65535
        %v1883 = vshrl.u32 %v1878, 16
        %v1884 = vmul.u32 %v1880, %v1882
        %v1885 = vmul.u32 %v1880, %v1883
        %v1886 = vmul.u32 %v1881, %v1882
        %v1887 = vmul.u32 %v1881, %v1883
        %v1888 = vshll.u32 %v1885, 16
        %v1889 = vshrl.u32 %v1885, 16
        %v1890 = vshll.u32 %v1886, 16
        %v1891 = vshrl.u32 %v1886, 16
        %vm1892 = vc.u32 %v1884, %v1888
        %v1893 = vsel %vm1892, 1, 0
        %v1894 = vadd.s32 %v1884, %v1888
        %v1895 = vadd.s32 %v1887, %v1893
        %vm1896 = vc.u32 %v1894, %v1890
        %v1897 = vsel %vm1896, 1, 0
        %v1898 = vadd.s32 %v1894, %v1890
        %v1899 = vadd.s32 %v1895, %v1897
        %v1900 = vadd.s32 %v1899, %v1889
        %v1901 = vadd.s32 %v1900, %v1891
        %v1902 = vand.u32 %v1879, 65535
        %v1903 = vshrl.u32 %v1879, 16
        %v1904 = vand.u32 %v1874, 65535
        %v1905 = vshrl.u32 %v1874, 16
        %v1906 = vmul.u32 %v1902, %v1904
        %v1907 = vmul.u32 %v1902, %v1905
        %v1908 = vmul.u32 %v1903, %v1904
        %v1909 = vmul.u32 %v1903, %v1905
        %v1910 = vshll.u32 %v1907, 16
        %v1911 = vshrl.u32 %v1907, 16
        %v1912 = vshll.u32 %v1908, 16
        %v1913 = vshrl.u32 %v1908, 16
        %vm1914 = vc.u32 %v1906, %v1910
        %v1915 = vsel %vm1914, 1, 0
        %v1916 = vadd.s32 %v1906, %v1910
        %v1917 = vadd.s32 %v1909, %v1915
        %vm1918 = vc.u32 %v1916, %v1912
        %v1919 = vsel %vm1918, 1, 0
        %v1920 = vadd.s32 %v1916, %v1912
        %v1921 = vadd.s32 %v1917, %v1919
        %v1922 = vadd.s32 %v1921, %v1911
        %v1923 = vadd.s32 %v1922, %v1913
        %v1924 = vmul.u32 %v1879, %v1870
        %v1925 = vadd.s32 %v1901, %v1920
        %vm1926 = vc.u32 %v1901, %v1920
        %v1927 = vadd.s32 %v1923, 1
        %v1928 = vsel %vm1926, %v1927, %v1923
        %v1929 = vadd.s32 %v1924, %v1928
        %v1930 = vadd.s32 %v1929, 536870912
        %v1931 = vshrl.u32 %v1930, 30
        %v1932 = vshll.u32 %v1931, 30
        %v1933 = vsub.s32 %v1929, %v1932
        %vm1934 = vcmp.lt.s32.totalorder %v1933, 0
        %v1935 = vsub.s32 0, %v1933
        %v1936 = vsel %vm1934, %v1935, %v1933
        %v1937 = vclz %v1936
        %v1938 = vsub.s32 %v1937, 2
        %vm1939 = vcmp.gt.s32.totalorder 0, %v1938
        %v1940 = vsel %vm1939, 0, %v1938
        %v1941 = vsub.s32 32, %v1940
        %v1942 = vshll.u32 %v1933, %v1940
        %v1943 = vshrl.u32 %v1925, %v1941
        %v1944 = vor.u32 %v1942, %v1943
        %v1945 = vsub.s32 4294967266, %v1940
        %v1946 = vadd.s32 %v1945, 127
        %v1947 = vshll.u32 %v1946, 23
        %v1948 = vor.u32 4788187, %v1947
        %v1949 = vand.u32 2147483647, %v1948
        %v1951 = vcvt.s32.f32 %v1944
        %v1952 = vmul.f32 %v1951, %v1949
        %v1953 = vxor.u32 %v1952, 2147483648
        %v1954 = vsel %vm1833, %v1953, %v1952
        %v1955 = vsub.s32 4, %v1931
        %v1956 = vsel %vm1833, %v1955, %v1931
        %v1957 = vsel %vm1832, %v583, %v1954
        %v1958 = vsel %vm1832, 0, %v1956
        %v1959 = vmul.f32 %v1957, %v1957
        %v1960 = vmul.f32 %v1959, -0.001358992
        %v1961 = vadd.f32 %v1960, 0.041655596
        %v1962 = vmul.f32 %v1959, %v1961
        %v1963 = vadd.f32 %v1962, -0.4999988
        %v1964 = vmul.f32 %v1959, %v1963
        %v1965 = vadd.f32 1.0, %v1964
        %v1966 = vmul.f32 %v1957, %v1957
        %v1967 = vmul.f32 %v1966, -0.00019511016
        %v1968 = vadd.f32 %v1967, 0.008332121
        %v1969 = vmul.f32 %v1966, %v1968
        %v1970 = vadd.f32 %v1969, -0.16666654
        %v1971 = vmul.f32 %v1966, %v1970
        %v1972 = vadd.f32 %v1971, 1.0
        %v1973 = vmul.f32 %v1972, %v1957
        %vm1974 = vweird.f32 %v583
        %v1975 = vadd.s32 %v1958, 3
        %v1976 = vand.u32 %v1975, 3
        %vm1977 = vcmp.lt.s32.totalorder %v1976, 2
        %vm1978 = vcmp.eq.s32.totalorder %v1976, 0
        %v1979 = vxor.u32 %v1973, 2147483648
        %v1980 = vsel %vm1978, %v1965, %v1979
        %vm1981 = vcmp.eq.s32.totalorder %v1976, 2
        %v1982 = vxor.u32 %v1965, 2147483648
        %v1983 = vsel %vm1981, %v1982, %v1973
        %v1984 = vsel %vm1977, %v1980, %v1983
        %v1985 = vsel %vm1974, nan, %v1984
        %v1986 = vand.u32 2147483647, %v584
        %vm1987 = vcmp.le.f32.partialorder %v1986, 0.7853982
        %vm1988 = vcmp.lt.s32.totalorder %v584, 0
        %v1989 = vand.u32 %v584, 2139095040
        %v1990 = vshrl.u32 %v1989, 23
        %v1991 = vsub.s32 %v1990, 127
        %v1992 = vand.u32 2147483647, %v584
        %v1993 = vand.u32 %v1992, 8388607
        %v1994 = vor.u32 %v1993, 8388608
        %v1995 = vsub.s32 0, %v1994
        %v1996 = vadd.s32 %v1991, 1
        %vm1997 = vcmp.gt.s32.totalorder %v1996, 0
        %v1998 = vsel %vm1997, %v1996, 0
        %v1999 = vshrl.u32 %v1998, 5
        %v2000 = vand.u32 %v1998, 31
        %v2001 = vsub.s32 32, %v2000
        %v2002 = vshrl.u32 683565275, %v2001
        %v2003 = vshll.u32 683565275, %v2000
        %v2004 = vshrl.u32 2475754826, %v2001
        %v2005 = vor.u32 %v2003, %v2004
        %v2006 = vshll.u32 2475754826, %v2000
        %v2007 = vshrl.u32 2131351028, %v2001
        %v2008 = vor.u32 %v2006, %v2007
        %v2009 = vshll.u32 2131351028, %v2000
        %v2010 = vshrl.u32 2102212464, %v2001
        %v2011 = vor.u32 %v2009, %v2010
        %v2012 = vshll.u32 2102212464, %v2000
        %v2013 = vshrl.u32 920167782, %v2001
        %v2014 = vor.u32 %v2012, %v2013
        %v2015 = vshll.u32 920167782, %v2000
        %v2016 = vshrl.u32 1326507024, %v2001
        %v2017 = vor.u32 %v2015, %v2016
        %vm2018 = vcmp.lt.s32.totalorder %v1999, 1
        %vm2019 = vcmp.lt.s32.totalorder %v1999, 2
        %vm2020 = vcmp.lt.s32.totalorder %v1999, 3
        %vm2021 = vcmp.lt.s32.totalorder %v1999, 4
        %v2022 = vsel %vm2018, %v2002, %v2005
        %v2023 = vsel %vm2021, %v2011, 2102212464
        %v2024 = vsel %vm2020, %v2008, %v2023
        %v2025 = vsel %vm2019, %v2022, %v2024
        %v2026 = vsel %vm2018, %v2005, %v2008
        %v2027 = vsel %vm2021, %v2014, 920167782
        %v2028 = vsel %vm2020, %v2011, %v2027
        %v2029 = vsel %vm2019, %v2026, %v2028
        %v2030 = vsel %vm2018, %v2008, %v2011
        %v2031 = vsel %vm2021, %v2017, 1326507024
        %v2032 = vsel %vm2020, %v2014, %v2031
        %v2033 = vsel %vm2019, %v2030, %v2032
        %v2034 = vshll.u32 %v1994, 8
        %v2035 = vand.u32 %v2034, 65535
        %v2036 = vshrl.u32 %v2034, 16
        %v2037 = vand.u32 %v2033, 65535
        %v2038 = vshrl.u32 %v2033, 16
        %v2039 = vmul.u32 %v2035, %v2037
        %v2040 = vmul.u32 %v2035, %v2038
        %v2041 = vmul.u32 %v2036, %v2037
        %v2042 = vmul.u32 %v2036, %v2038
        %v2043 = vshll.u32 %v2040, 16
        %v2044 = vshrl.u32 %v2040, 16
        %v2045 = vshll.u32 %v2041, 16
        %v2046 = vshrl.u32 %v2041, 16
        %vm2047 = vc.u32 %v2039, %v2043
        %v2048 = vsel %vm2047, 1, 0
        %v2049 = vadd.s32 %v2039, %v2043
        %v2050 = vadd.s32 %v2042, %v2048
        %vm2051 = vc.u32 %v2049, %v2045
        %v2052 = vsel %vm2051, 1, 0
        %v2053 = vadd.s32 %v2049, %v2045
        %v2054 = vadd.s32 %v2050, %v2052
        %v2055 = vadd.s32 %v2054, %v2044
        %v2056 = vadd.s32 %v2055, %v2046
        %v2057 = vand.u32 %v2034, 65535
        %v2058 = vshrl.u32 %v2034, 16
        %v2059 = vand.u32 %v2029, 65535
        %v2060 = vshrl.u32 %v2029, 16
        %v2061 = vmul.u32 %v2057, %v2059
        %v2062 = vmul.u32 %v2057, %v2060
        %v2063 = vmul.u32 %v2058, %v2059
        %v2064 = vmul.u32 %v2058, %v2060
        %v2065 = vshll.u32 %v2062, 16
        %v2066 = vshrl.u32 %v2062, 16
        %v2067 = vshll.u32 %v2063, 16
        %v2068 = vshrl.u32 %v2063, 16
        %vm2069 = vc.u32 %v2061, %v2065
        %v2070 = vsel %vm2069, 1, 0
        %v2071 = vadd.s32 %v2061, %v2065
        %v2072 = vadd.s32 %v2064, %v2070
        %vm2073 = vc.u32 %v2071, %v2067
        %v2074 = vsel %vm2073, 1, 0
        %v2075 = vadd.s32 %v2071, %v2067
        %v2076 = vadd.s32 %v2072, %v2074
        %v2077 = vadd.s32 %v2076, %v2066
        %v2078 = vadd.s32 %v2077, %v2068
        %v2079 = vmul.u32 %v2034, %v2025
        %v2080 = vadd.s32 %v2056, %v2075
        %vm2081 = vc.u32 %v2056, %v2075
        %v2082 = vadd.s32 %v2078, 1
        %v2083 = vsel %vm2081, %v2082, %v2078
        %v2084 = vadd.s32 %v2079, %v2083
        %v2085 = vadd.s32 %v2084, 536870912
        %v2086 = vshrl.u32 %v2085, 30
        %v2087 = vshll.u32 %v2086, 30
        %v2088 = vsub.s32 %v2084, %v2087
        %vm2089 = vcmp.lt.s32.totalorder %v2088, 0
        %v2090 = vsub.s32 0, %v2088
        %v2091 = vsel %vm2089, %v2090, %v2088
        %v2092 = vclz %v2091
        %v2093 = vsub.s32 %v2092, 2
        %vm2094 = vcmp.gt.s32.totalorder 0, %v2093
        %v2095 = vsel %vm2094, 0, %v2093
        %v2096 = vsub.s32 32, %v2095
        %v2097 = vshll.u32 %v2088, %v2095
        %v2098 = vshrl.u32 %v2080, %v2096
        %v2099 = vor.u32 %v2097, %v2098
        %v2100 = vsub.s32 4294967266, %v2095
        %v2101 = vadd.s32 %v2100, 127
        %v2102 = vshll.u32 %v2101, 23
        %v2103 = vor.u32 4788187, %v2102
        %v2104 = vand.u32 2147483647, %v2103
        %v2106 = vcvt.s32.f32 %v2099
        %v2107 = vmul.f32 %v2106, %v2104
        %v2108 = vxor.u32 %v2107, 2147483648
        %v2109 = vsel %vm1988, %v2108, %v2107
        %v2110 = vsub.s32 4, %v2086
        %v2111 = vsel %vm1988, %v2110, %v2086
        %v2112 = vsel %vm1987, %v584, %v2109
        %v2113 = vsel %vm1987, 0, %v2111
        %v2114 = vmul.f32 %v2112, %v2112
        %v2115 = vmul.f32 %v2114, -0.001358992
        %v2116 = vadd.f32 %v2115, 0.041655596
        %v2117 = vmul.f32 %v2114, %v2116
        %v2118 = vadd.f32 %v2117, -0.4999988
        %v2119 = vmul.f32 %v2114, %v2118
        %v2120 = vadd.f32 1.0, %v2119
        %v2121 = vmul.f32 %v2112, %v2112
        %v2122 = vmul.f32 %v2121, -0.00019511016
        %v2123 = vadd.f32 %v2122, 0.008332121
        %v2124 = vmul.f32 %v2121, %v2123
        %v2125 = vadd.f32 %v2124, -0.16666654
        %v2126 = vmul.f32 %v2121, %v2125
        %v2127 = vadd.f32 %v2126, 1.0
        %v2128 = vmul.f32 %v2127, %v2112
        %vm2129 = vweird.f32 %v584
        %v2130 = vadd.s32 %v2113, 3
        %v2131 = vand.u32 %v2130, 3
        %vm2132 = vcmp.lt.s32.totalorder %v2131, 2
        %vm2133 = vcmp.eq.s32.totalorder %v2131, 0
        %v2134 = vxor.u32 %v2128, 2147483648
        %v2135 = vsel %vm2133, %v2120, %v2134
        %vm2136 = vcmp.eq.s32.totalorder %v2131, 2
        %v2137 = vxor.u32 %v2120, 2147483648
        %v2138 = vsel %vm2136, %v2137, %v2128
        %v2139 = vsel %vm2132, %v2135, %v2138
        %v2140 = vsel %vm2129, nan, %v2139
        %v2141 = vand.u32 2147483647, %v585
        %vm2142 = vcmp.le.f32.partialorder %v2141, 0.7853982
        %vm2143 = vcmp.lt.s32.totalorder %v585, 0
        %v2144 = vand.u32 %v585, 2139095040
        %v2145 = vshrl.u32 %v2144, 23
        %v2146 = vsub.s32 %v2145, 127
        %v2147 = vand.u32 2147483647, %v585
        %v2148 = vand.u32 %v2147, 8388607
        %v2149 = vor.u32 %v2148, 8388608
        %v2150 = vsub.s32 0, %v2149
        %v2151 = vadd.s32 %v2146, 1
        %vm2152 = vcmp.gt.s32.totalorder %v2151, 0
        %v2153 = vsel %vm2152, %v2151, 0
        %v2154 = vshrl.u32 %v2153, 5
        %v2155 = vand.u32 %v2153, 31
        %v2156 = vsub.s32 32, %v2155
        %v2157 = vshrl.u32 683565275, %v2156
        %v2158 = vshll.u32 683565275, %v2155
        %v2159 = vshrl.u32 2475754826, %v2156
        %v2160 = vor.u32 %v2158, %v2159
        %v2161 = vshll.u32 2475754826, %v2155
        %v2162 = vshrl.u32 2131351028, %v2156
        %v2163 = vor.u32 %v2161, %v2162
        %v2164 = vshll.u32 2131351028, %v2155
        %v2165 = vshrl.u32 2102212464, %v2156
        %v2166 = vor.u32 %v2164, %v2165
        %v2167 = vshll.u32 2102212464, %v2155
        %v2168 = vshrl.u32 920167782, %v2156
        %v2169 = vor.u32 %v2167, %v2168
        %v2170 = vshll.u32 920167782, %v2155
        %v2171 = vshrl.u32 1326507024, %v2156
        %v2172 = vor.u32 %v2170, %v2171
        %vm2173 = vcmp.lt.s32.totalorder %v2154, 1
        %vm2174 = vcmp.lt.s32.totalorder %v2154, 2
        %vm2175 = vcmp.lt.s32.totalorder %v2154, 3
        %vm2176 = vcmp.lt.s32.totalorder %v2154, 4
        %v2177 = vsel %vm2173, %v2157, %v2160
        %v2178 = vsel %vm2176, %v2166, 2102212464
        %v2179 = vsel %vm2175, %v2163, %v2178
        %v2180 = vsel %vm2174, %v2177, %v2179
        %v2181 = vsel %vm2173, %v2160, %v2163
        %v2182 = vsel %vm2176, %v2169, 920167782
        %v2183 = vsel %vm2175, %v2166, %v2182
        %v2184 = vsel %vm2174, %v2181, %v2183
        %v2185 = vsel %vm2173, %v2163, %v2166
        %v2186 = vsel %vm2176, %v2172, 1326507024
        %v2187 = vsel %vm2175, %v2169, %v2186
        %v2188 = vsel %vm2174, %v2185, %v2187
        %v2189 = vshll.u32 %v2149, 8
        %v2190 = vand.u32 %v2189, 65535
        %v2191 = vshrl.u32 %v2189, 16
        %v2192 = vand.u32 %v2188, 65535
        %v2193 = vshrl.u32 %v2188, 16
        %v2194 = vmul.u32 %v2190, %v2192
        %v2195 = vmul.u32 %v2190, %v2193
        %v2196 = vmul.u32 %v2191, %v2192
        %v2197 = vmul.u32 %v2191, %v2193
        %v2198 = vshll.u32 %v2195, 16
        %v2199 = vshrl.u32 %v2195, 16
        %v2200 = vshll.u32 %v2196, 16
        %v2201 = vshrl.u32 %v2196, 16
        %vm2202 = vc.u32 %v2194, %v2198
        %v2203 = vsel %vm2202, 1, 0
        %v2204 = vadd.s32 %v2194, %v2198
        %v2205 = vadd.s32 %v2197, %v2203
        %vm2206 = vc.u32 %v2204, %v2200
        %v2207 = vsel %vm2206, 1, 0
        %v2208 = vadd.s32 %v2204, %v2200
        %v2209 = vadd.s32 %v2205, %v2207
        %v2210 = vadd.s32 %v2209, %v2199
        %v2211 = vadd.s32 %v2210, %v2201
        %v2212 = vand.u32 %v2189, 65535
        %v2213 = vshrl.u32 %v2189, 16
        %v2214 = vand.u32 %v2184, 65535
        %v2215 = vshrl.u32 %v2184, 16
        %v2216 = vmul.u32 %v2212, %v2214
        %v2217 = vmul.u32 %v2212, %v2215
        %v2218 = vmul.u32 %v2213, %v2214
        %v2219 = vmul.u32 %v2213, %v2215
        %v2220 = vshll.u32 %v2217, 16
        %v2221 = vshrl.u32 %v2217, 16
        %v2222 = vshll.u32 %v2218, 16
        %v2223 = vshrl.u32 %v2218, 16
        %vm2224 = vc.u32 %v2216, %v2220
        %v2225 = vsel %vm2224, 1, 0
        %v2226 = vadd.s32 %v2216, %v2220
        %v2227 = vadd.s32 %v2219, %v2225
        %vm2228 = vc.u32 %v2226, %v2222
        %v2229 = vsel %vm2228, 1, 0
        %v2230 = vadd.s32 %v2226, %v2222
        %v2231 = vadd.s32 %v2227, %v2229
        %v2232 = vadd.s32 %v2231, %v2221
        %v2233 = vadd.s32 %v2232, %v2223
        %v2234 = vmul.u32 %v2189, %v2180
        %v2235 = vadd.s32 %v2211, %v2230
        %vm2236 = vc.u32 %v2211, %v2230
        %v2237 = vadd.s32 %v2233, 1
        %v2238 = vsel %vm2236, %v2237, %v2233
        %v2239 = vadd.s32 %v2234, %v2238
        %v2240 = vadd.s32 %v2239, 536870912
        %v2241 = vshrl.u32 %v2240, 30
        %v2242 = vshll.u32 %v2241, 30
        %v2243 = vsub.s32 %v2239, %v2242
        %vm2244 = vcmp.lt.s32.totalorder %v2243, 0
        %v2245 = vsub.s32 0, %v2243
        %v2246 = vsel %vm2244, %v2245, %v2243
        %v2247 = vclz %v2246
        %v2248 = vsub.s32 %v2247, 2
        %vm2249 = vcmp.gt.s32.totalorder 0, %v2248
        %v2250 = vsel %vm2249, 0, %v2248
        %v2251 = vsub.s32 32, %v2250
        %v2252 = vshll.u32 %v2243, %v2250
        %v2253 = vshrl.u32 %v2235, %v2251
        %v2254 = vor.u32 %v2252, %v2253
        %v2255 = vsub.s32 4294967266, %v2250
        %v2256 = vadd.s32 %v2255, 127
        %v2257 = vshll.u32 %v2256, 23
        %v2258 = vor.u32 4788187, %v2257
        %v2259 = vand.u32 2147483647, %v2258
        %v2261 = vcvt.s32.f32 %v2254
        %v2262 = vmul.f32 %v2261, %v2259
        %v2263 = vxor.u32 %v2262, 2147483648
        %v2264 = vsel %vm2143, %v2263, %v2262
        %v2265 = vsub.s32 4, %v2241
        %v2266 = vsel %vm2143, %v2265, %v2241
        %v2267 = vsel %vm2142, %v585, %v2264
        %v2268 = vsel %vm2142, 0, %v2266
        %v2269 = vmul.f32 %v2267, %v2267
        %v2270 = vmul.f32 %v2269, -0.001358992
        %v2271 = vadd.f32 %v2270, 0.041655596
        %v2272 = vmul.f32 %v2269, %v2271
        %v2273 = vadd.f32 %v2272, -0.4999988
        %v2274 = vmul.f32 %v2269, %v2273
        %v2275 = vadd.f32 1.0, %v2274
        %v2276 = vmul.f32 %v2267, %v2267
        %v2277 = vmul.f32 %v2276, -0.00019511016
        %v2278 = vadd.f32 %v2277, 0.008332121
        %v2279 = vmul.f32 %v2276, %v2278
        %v2280 = vadd.f32 %v2279, -0.16666654
        %v2281 = vmul.f32 %v2276, %v2280
        %v2282 = vadd.f32 %v2281, 1.0
        %v2283 = vmul.f32 %v2282, %v2267
        %vm2284 = vweird.f32 %v585
        %v2285 = vadd.s32 %v2268, 3
        %v2286 = vand.u32 %v2285, 3
        %vm2287 = vcmp.lt.s32.totalorder %v2286, 2
        %vm2288 = vcmp.eq.s32.totalorder %v2286, 0
        %v2289 = vxor.u32 %v2283, 2147483648
        %v2290 = vsel %vm2288, %v2275, %v2289
        %vm2291 = vcmp.eq.s32.totalorder %v2286, 2
        %v2292 = vxor.u32 %v2275, 2147483648
        %v2293 = vsel %vm2291, %v2292, %v2283
        %v2294 = vsel %vm2287, %v2290, %v2293
        %v2295 = vsel %vm2284, nan, %v2294
        %v2296 = vand.u32 2147483647, %v586
        %vm2297 = vcmp.le.f32.partialorder %v2296, 0.7853982
        %vm2298 = vcmp.lt.s32.totalorder %v586, 0
        %v2299 = vand.u32 %v586, 2139095040
        %v2300 = vshrl.u32 %v2299, 23
        %v2301 = vsub.s32 %v2300, 127
        %v2302 = vand.u32 2147483647, %v586
        %v2303 = vand.u32 %v2302, 8388607
        %v2304 = vor.u32 %v2303, 8388608
        %v2305 = vsub.s32 0, %v2304
        %v2306 = vadd.s32 %v2301, 1
        %vm2307 = vcmp.gt.s32.totalorder %v2306, 0
        %v2308 = vsel %vm2307, %v2306, 0
        %v2309 = vshrl.u32 %v2308, 5
        %v2310 = vand.u32 %v2308, 31
        %v2311 = vsub.s32 32, %v2310
        %v2312 = vshrl.u32 683565275, %v2311
        %v2313 = vshll.u32 683565275, %v2310
        %v2314 = vshrl.u32 2475754826, %v2311
        %v2315 = vor.u32 %v2313, %v2314
        %v2316 = vshll.u32 2475754826, %v2310
        %v2317 = vshrl.u32 2131351028, %v2311
        %v2318 = vor.u32 %v2316, %v2317
        %v2319 = vshll.u32 2131351028, %v2310
        %v2320 = vshrl.u32 2102212464, %v2311
        %v2321 = vor.u32 %v2319, %v2320
        %v2322 = vshll.u32 2102212464, %v2310
        %v2323 = vshrl.u32 920167782, %v2311
        %v2324 = vor.u32 %v2322, %v2323
        %v2325 = vshll.u32 920167782, %v2310
        %v2326 = vshrl.u32 1326507024, %v2311
        %v2327 = vor.u32 %v2325, %v2326
        %vm2328 = vcmp.lt.s32.totalorder %v2309, 1
        %vm2329 = vcmp.lt.s32.totalorder %v2309, 2
        %vm2330 = vcmp.lt.s32.totalorder %v2309, 3
        %vm2331 = vcmp.lt.s32.totalorder %v2309, 4
        %v2332 = vsel %vm2328, %v2312, %v2315
        %v2333 = vsel %vm2331, %v2321, 2102212464
        %v2334 = vsel %vm2330, %v2318, %v2333
        %v2335 = vsel %vm2329, %v2332, %v2334
        %v2336 = vsel %vm2328, %v2315, %v2318
        %v2337 = vsel %vm2331, %v2324, 920167782
        %v2338 = vsel %vm2330, %v2321, %v2337
        %v2339 = vsel %vm2329, %v2336, %v2338
        %v2340 = vsel %vm2328, %v2318, %v2321
        %v2341 = vsel %vm2331, %v2327, 1326507024
        %v2342 = vsel %vm2330, %v2324, %v2341
        %v2343 = vsel %vm2329, %v2340, %v2342
        %v2344 = vshll.u32 %v2304, 8
        %v2345 = vand.u32 %v2344, 65535
        %v2346 = vshrl.u32 %v2344, 16
        %v2347 = vand.u32 %v2343, 65535
        %v2348 = vshrl.u32 %v2343, 16
        %v2349 = vmul.u32 %v2345, %v2347
        %v2350 = vmul.u32 %v2345, %v2348
        %v2351 = vmul.u32 %v2346, %v2347
        %v2352 = vmul.u32 %v2346, %v2348
        %v2353 = vshll.u32 %v2350, 16
        %v2354 = vshrl.u32 %v2350, 16
        %v2355 = vshll.u32 %v2351, 16
        %v2356 = vshrl.u32 %v2351, 16
        %vm2357 = vc.u32 %v2349, %v2353
        %v2358 = vsel %vm2357, 1, 0
        %v2359 = vadd.s32 %v2349, %v2353
        %v2360 = vadd.s32 %v2352, %v2358
        %vm2361 = vc.u32 %v2359, %v2355
        %v2362 = vsel %vm2361, 1, 0
        %v2363 = vadd.s32 %v2359, %v2355
        %v2364 = vadd.s32 %v2360, %v2362
        %v2365 = vadd.s32 %v2364, %v2354
        %v2366 = vadd.s32 %v2365, %v2356
        %v2367 = vand.u32 %v2344, 65535
        %v2368 = vshrl.u32 %v2344, 16
        %v2369 = vand.u32 %v2339, 65535
        %v2370 = vshrl.u32 %v2339, 16
        %v2371 = vmul.u32 %v2367, %v2369
        %v2372 = vmul.u32 %v2367, %v2370
        %v2373 = vmul.u32 %v2368, %v2369
        %v2374 = vmul.u32 %v2368, %v2370
        %v2375 = vshll.u32 %v2372, 16
        %v2376 = vshrl.u32 %v2372, 16
        %v2377 = vshll.u32 %v2373, 16
        %v2378 = vshrl.u32 %v2373, 16
        %vm2379 = vc.u32 %v2371, %v2375
        %v2380 = vsel %vm2379, 1, 0
        %v2381 = vadd.s32 %v2371, %v2375
        %v2382 = vadd.s32 %v2374, %v2380
        %vm2383 = vc.u32 %v2381, %v2377
        %v2384 = vsel %vm2383, 1, 0
        %v2385 = vadd.s32 %v2381, %v2377
        %v2386 = vadd.s32 %v2382, %v2384
        %v2387 = vadd.s32 %v2386, %v2376
        %v2388 = vadd.s32 %v2387, %v2378
        %v2389 = vmul.u32 %v2344, %v2335
        %v2390 = vadd.s32 %v2366, %v2385
        %vm2391 = vc.u32 %v2366, %v2385
        %v2392 = vadd.s32 %v2388, 1
        %v2393 = vsel %vm2391, %v2392, %v2388
        %v2394 = vadd.s32 %v2389, %v2393
        %v2395 = vadd.s32 %v2394, 536870912
        %v2396 = vshrl.u32 %v2395, 30
        %v2397 = vshll.u32 %v2396, 30
        %v2398 = vsub.s32 %v2394, %v2397
        %vm2399 = vcmp.lt.s32.totalorder %v2398, 0
        %v2400 = vsub.s32 0, %v2398
        %v2401 = vsel %vm2399, %v2400, %v2398
        %v2402 = vclz %v2401
        %v2403 = vsub.s32 %v2402, 2
        %vm2404 = vcmp.gt.s32.totalorder 0, %v2403
        %v2405 = vsel %vm2404, 0, %v2403
        %v2406 = vsub.s32 32, %v2405
        %v2407 = vshll.u32 %v2398, %v2405
        %v2408 = vshrl.u32 %v2390, %v2406
        %v2409 = vor.u32 %v2407, %v2408
        %v2410 = vsub.s32 4294967266, %v2405
        %v2411 = vadd.s32 %v2410, 127
        %v2412 = vshll.u32 %v2411, 23
        %v2413 = vor.u32 4788187, %v2412
        %v2414 = vand.u32 2147483647, %v2413
        %v2416 = vcvt.s32.f32 %v2409
        %v2417 = vmul.f32 %v2416, %v2414
        %v2418 = vxor.u32 %v2417, 2147483648
        %v2419 = vsel %vm2298, %v2418, %v2417
        %v2420 = vsub.s32 4, %v2396
        %v2421 = vsel %vm2298, %v2420, %v2396
        %v2422 = vsel %vm2297, %v586, %v2419
        %v2423 = vsel %vm2297, 0, %v2421
        %v2424 = vmul.f32 %v2422, %v2422
        %v2425 = vmul.f32 %v2424, -0.001358992
        %v2426 = vadd.f32 %v2425, 0.041655596
        %v2427 = vmul.f32 %v2424, %v2426
        %v2428 = vadd.f32 %v2427, -0.4999988
        %v2429 = vmul.f32 %v2424, %v2428
        %v2430 = vadd.f32 1.0, %v2429
        %v2431 = vmul.f32 %v2422, %v2422
        %v2432 = vmul.f32 %v2431, -0.00019511016
        %v2433 = vadd.f32 %v2432, 0.008332121
        %v2434 = vmul.f32 %v2431, %v2433
        %v2435 = vadd.f32 %v2434, -0.16666654
        %v2436 = vmul.f32 %v2431, %v2435
        %v2437 = vadd.f32 %v2436, 1.0
        %v2438 = vmul.f32 %v2437, %v2422
        %vm2439 = vweird.f32 %v586
        %v2440 = vadd.s32 %v2423, 3
        %v2441 = vand.u32 %v2440, 3
        %vm2442 = vcmp.lt.s32.totalorder %v2441, 2
        %vm2443 = vcmp.eq.s32.totalorder %v2441, 0
        %v2444 = vxor.u32 %v2438, 2147483648
        %v2445 = vsel %vm2443, %v2430, %v2444
        %vm2446 = vcmp.eq.s32.totalorder %v2441, 2
        %v2447 = vxor.u32 %v2430, 2147483648
        %v2448 = vsel %vm2446, %v2447, %v2438
        %v2449 = vsel %vm2442, %v2445, %v2448
        %v2450 = vsel %vm2439, nan, %v2449
        %v2451 = vand.u32 2147483647, %v587
        %vm2452 = vcmp.le.f32.partialorder %v2451, 0.7853982
        %vm2453 = vcmp.lt.s32.totalorder %v587, 0
        %v2454 = vand.u32 %v587, 2139095040
        %v2455 = vshrl.u32 %v2454, 23
        %v2456 = vsub.s32 %v2455, 127
        %v2457 = vand.u32 2147483647, %v587
        %v2458 = vand.u32 %v2457, 8388607
        %v2459 = vor.u32 %v2458, 8388608
        %v2460 = vsub.s32 0, %v2459
        %v2461 = vadd.s32 %v2456, 1
        %vm2462 = vcmp.gt.s32.totalorder %v2461, 0
        %v2463 = vsel %vm2462, %v2461, 0
        %v2464 = vshrl.u32 %v2463, 5
        %v2465 = vand.u32 %v2463, 31
        %v2466 = vsub.s32 32, %v2465
        %v2467 = vshrl.u32 683565275, %v2466
        %v2468 = vshll.u32 683565275, %v2465
        %v2469 = vshrl.u32 2475754826, %v2466
        %v2470 = vor.u32 %v2468, %v2469
        %v2471 = vshll.u32 2475754826, %v2465
        %v2472 = vshrl.u32 2131351028, %v2466
        %v2473 = vor.u32 %v2471, %v2472
        %v2474 = vshll.u32 2131351028, %v2465
        %v2475 = vshrl.u32 2102212464, %v2466
        %v2476 = vor.u32 %v2474, %v2475
        %v2477 = vshll.u32 2102212464, %v2465
        %v2478 = vshrl.u32 920167782, %v2466
        %v2479 = vor.u32 %v2477, %v2478
        %v2480 = vshll.u32 920167782, %v2465
        %v2481 = vshrl.u32 1326507024, %v2466
        %v2482 = vor.u32 %v2480, %v2481
        %vm2483 = vcmp.lt.s32.totalorder %v2464, 1
        %vm2484 = vcmp.lt.s32.totalorder %v2464, 2
        %vm2485 = vcmp.lt.s32.totalorder %v2464, 3
        %vm2486 = vcmp.lt.s32.totalorder %v2464, 4
        %v2487 = vsel %vm2483, %v2467, %v2470
        %v2488 = vsel %vm2486, %v2476, 2102212464
        %v2489 = vsel %vm2485, %v2473, %v2488
        %v2490 = vsel %vm2484, %v2487, %v2489
        %v2491 = vsel %vm2483, %v2470, %v2473
        %v2492 = vsel %vm2486, %v2479, 920167782
        %v2493 = vsel %vm2485, %v2476, %v2492
        %v2494 = vsel %vm2484, %v2491, %v2493
        %v2495 = vsel %vm2483, %v2473, %v2476
        %v2496 = vsel %vm2486, %v2482, 1326507024
        %v2497 = vsel %vm2485, %v2479, %v2496
        %v2498 = vsel %vm2484, %v2495, %v2497
        %v2499 = vshll.u32 %v2459, 8
        %v2500 = vand.u32 %v2499, 65535
        %v2501 = vshrl.u32 %v2499, 16
        %v2502 = vand.u32 %v2498, 65535
        %v2503 = vshrl.u32 %v2498, 16
        %v2504 = vmul.u32 %v2500, %v2502
        %v2505 = vmul.u32 %v2500, %v2503
        %v2506 = vmul.u32 %v2501, %v2502
        %v2507 = vmul.u32 %v2501, %v2503
        %v2508 = vshll.u32 %v2505, 16
        %v2509 = vshrl.u32 %v2505, 16
        %v2510 = vshll.u32 %v2506, 16
        %v2511 = vshrl.u32 %v2506, 16
        %vm2512 = vc.u32 %v2504, %v2508
        %v2513 = vsel %vm2512, 1, 0
        %v2514 = vadd.s32 %v2504, %v2508
        %v2515 = vadd.s32 %v2507, %v2513
        %vm2516 = vc.u32 %v2514, %v2510
        %v2517 = vsel %vm2516, 1, 0
        %v2518 = vadd.s32 %v2514, %v2510
        %v2519 = vadd.s32 %v2515, %v2517
        %v2520 = vadd.s32 %v2519, %v2509
        %v2521 = vadd.s32 %v2520, %v2511
        %v2522 = vand.u32 %v2499, 65535
        %v2523 = vshrl.u32 %v2499, 16
        %v2524 = vand.u32 %v2494, 65535
        %v2525 = vshrl.u32 %v2494, 16
        %v2526 = vmul.u32 %v2522, %v2524
        %v2527 = vmul.u32 %v2522, %v2525
        %v2528 = vmul.u32 %v2523, %v2524
        %v2529 = vmul.u32 %v2523, %v2525
        %v2530 = vshll.u32 %v2527, 16
        %v2531 = vshrl.u32 %v2527, 16
        %v2532 = vshll.u32 %v2528, 16
        %v2533 = vshrl.u32 %v2528, 16
        %vm2534 = vc.u32 %v2526, %v2530
        %v2535 = vsel %vm2534, 1, 0
        %v2536 = vadd.s32 %v2526, %v2530
        %v2537 = vadd.s32 %v2529, %v2535
        %vm2538 = vc.u32 %v2536, %v2532
        %v2539 = vsel %vm2538, 1, 0
        %v2540 = vadd.s32 %v2536, %v2532
        %v2541 = vadd.s32 %v2537, %v2539
        %v2542 = vadd.s32 %v2541, %v2531
        %v2543 = vadd.s32 %v2542, %v2533
        %v2544 = vmul.u32 %v2499, %v2490
        %v2545 = vadd.s32 %v2521, %v2540
        %vm2546 = vc.u32 %v2521, %v2540
        %v2547 = vadd.s32 %v2543, 1
        %v2548 = vsel %vm2546, %v2547, %v2543
        %v2549 = vadd.s32 %v2544, %v2548
        %v2550 = vadd.s32 %v2549, 536870912
        %v2551 = vshrl.u32 %v2550, 30
        %v2552 = vshll.u32 %v2551, 30
        %v2553 = vsub.s32 %v2549, %v2552
        %vm2554 = vcmp.lt.s32.totalorder %v2553, 0
        %v2555 = vsub.s32 0, %v2553
        %v2556 = vsel %vm2554, %v2555, %v2553
        %v2557 = vclz %v2556
        %v2558 = vsub.s32 %v2557, 2
        %vm2559 = vcmp.gt.s32.totalorder 0, %v2558
        %v2560 = vsel %vm2559, 0, %v2558
        %v2561 = vsub.s32 32, %v2560
        %v2562 = vshll.u32 %v2553, %v2560
        %v2563 = vshrl.u32 %v2545, %v2561
        %v2564 = vor.u32 %v2562, %v2563
        %v2565 = vsub.s32 4294967266, %v2560
        %v2566 = vadd.s32 %v2565, 127
        %v2567 = vshll.u32 %v2566, 23
        %v2568 = vor.u32 4788187, %v2567
        %v2569 = vand.u32 2147483647, %v2568
        %v2571 = vcvt.s32.f32 %v2564
        %v2572 = vmul.f32 %v2571, %v2569
        %v2573 = vxor.u32 %v2572, 2147483648
        %v2574 = vsel %vm2453, %v2573, %v2572
        %v2575 = vsub.s32 4, %v2551
        %v2576 = vsel %vm2453, %v2575, %v2551
        %v2577 = vsel %vm2452, %v587, %v2574
        %v2578 = vsel %vm2452, 0, %v2576
        %v2579 = vmul.f32 %v2577, %v2577
        %v2580 = vmul.f32 %v2579, -0.001358992
        %v2581 = vadd.f32 %v2580, 0.041655596
        %v2582 = vmul.f32 %v2579, %v2581
        %v2583 = vadd.f32 %v2582, -0.4999988
        %v2584 = vmul.f32 %v2579, %v2583
        %v2585 = vadd.f32 1.0, %v2584
        %v2586 = vmul.f32 %v2577, %v2577
        %v2587 = vmul.f32 %v2586, -0.00019511016
        %v2588 = vadd.f32 %v2587, 0.008332121
        %v2589 = vmul.f32 %v2586, %v2588
        %v2590 = vadd.f32 %v2589, -0.16666654
        %v2591 = vmul.f32 %v2586, %v2590
        %v2592 = vadd.f32 %v2591, 1.0
        %v2593 = vmul.f32 %v2592, %v2577
        %vm2594 = vweird.f32 %v587
        %v2595 = vadd.s32 %v2578, 3
        %v2596 = vand.u32 %v2595, 3
        %vm2597 = vcmp.lt.s32.totalorder %v2596, 2
        %vm2598 = vcmp.eq.s32.totalorder %v2596, 0
        %v2599 = vxor.u32 %v2593, 2147483648
        %v2600 = vsel %vm2598, %v2585, %v2599
        %vm2601 = vcmp.eq.s32.totalorder %v2596, 2
        %v2602 = vxor.u32 %v2585, 2147483648
        %v2603 = vsel %vm2601, %v2602, %v2593
        %v2604 = vsel %vm2597, %v2600, %v2603
        %v2605 = vsel %vm2594, nan, %v2604
        %v2606 = vand.u32 2147483647, %v588
        %vm2607 = vcmp.le.f32.partialorder %v2606, 0.7853982
        %vm2608 = vcmp.lt.s32.totalorder %v588, 0
        %v2609 = vand.u32 %v588, 2139095040
        %v2610 = vshrl.u32 %v2609, 23
        %v2611 = vsub.s32 %v2610, 127
        %v2612 = vand.u32 2147483647, %v588
        %v2613 = vand.u32 %v2612, 8388607
        %v2614 = vor.u32 %v2613, 8388608
        %v2615 = vsub.s32 0, %v2614
        %v2616 = vadd.s32 %v2611, 1
        %vm2617 = vcmp.gt.s32.totalorder %v2616, 0
        %v2618 = vsel %vm2617, %v2616, 0
        %v2619 = vshrl.u32 %v2618, 5
        %v2620 = vand.u32 %v2618, 31
        %v2621 = vsub.s32 32, %v2620
        %v2622 = vshrl.u32 683565275, %v2621
        %v2623 = vshll.u32 683565275, %v2620
        %v2624 = vshrl.u32 2475754826, %v2621
        %v2625 = vor.u32 %v2623, %v2624
        %v2626 = vshll.u32 2475754826, %v2620
        %v2627 = vshrl.u32 2131351028, %v2621
        %v2628 = vor.u32 %v2626, %v2627
        %v2629 = vshll.u32 2131351028, %v2620
        %v2630 = vshrl.u32 2102212464, %v2621
        %v2631 = vor.u32 %v2629, %v2630
        %v2632 = vshll.u32 2102212464, %v2620
        %v2633 = vshrl.u32 920167782, %v2621
        %v2634 = vor.u32 %v2632, %v2633
        %v2635 = vshll.u32 920167782, %v2620
        %v2636 = vshrl.u32 1326507024, %v2621
        %v2637 = vor.u32 %v2635, %v2636
        %vm2638 = vcmp.lt.s32.totalorder %v2619, 1
        %vm2639 = vcmp.lt.s32.totalorder %v2619, 2
        %vm2640 = vcmp.lt.s32.totalorder %v2619, 3
        %vm2641 = vcmp.lt.s32.totalorder %v2619, 4
        %v2642 = vsel %vm2638, %v2622, %v2625
        %v2643 = vsel %vm2641, %v2631, 2102212464
        %v2644 = vsel %vm2640, %v2628, %v2643
        %v2645 = vsel %vm2639, %v2642, %v2644
        %v2646 = vsel %vm2638, %v2625, %v2628
        %v2647 = vsel %vm2641, %v2634, 920167782
        %v2648 = vsel %vm2640, %v2631, %v2647
        %v2649 = vsel %vm2639, %v2646, %v2648
        %v2650 = vsel %vm2638, %v2628, %v2631
        %v2651 = vsel %vm2641, %v2637, 1326507024
        %v2652 = vsel %vm2640, %v2634, %v2651
        %v2653 = vsel %vm2639, %v2650, %v2652
        %v2654 = vshll.u32 %v2614, 8
        %v2655 = vand.u32 %v2654, 65535
        %v2656 = vshrl.u32 %v2654, 16
        %v2657 = vand.u32 %v2653, 65535
        %v2658 = vshrl.u32 %v2653, 16
        %v2659 = vmul.u32 %v2655, %v2657
        %v2660 = vmul.u32 %v2655, %v2658
        %v2661 = vmul.u32 %v2656, %v2657
        %v2662 = vmul.u32 %v2656, %v2658
        %v2663 = vshll.u32 %v2660, 16
        %v2664 = vshrl.u32 %v2660, 16
        %v2665 = vshll.u32 %v2661, 16
        %v2666 = vshrl.u32 %v2661, 16
        %vm2667 = vc.u32 %v2659, %v2663
        %v2668 = vsel %vm2667, 1, 0
        %v2669 = vadd.s32 %v2659, %v2663
        %v2670 = vadd.s32 %v2662, %v2668
        %vm2671 = vc.u32 %v2669, %v2665
        %v2672 = vsel %vm2671, 1, 0
        %v2673 = vadd.s32 %v2669, %v2665
        %v2674 = vadd.s32 %v2670, %v2672
        %v2675 = vadd.s32 %v2674, %v2664
        %v2676 = vadd.s32 %v2675, %v2666
        %v2677 = vand.u32 %v2654, 65535
        %v2678 = vshrl.u32 %v2654, 16
        %v2679 = vand.u32 %v2649, 65535
        %v2680 = vshrl.u32 %v2649, 16
        %v2681 = vmul.u32 %v2677, %v2679
        %v2682 = vmul.u32 %v2677, %v2680
        %v2683 = vmul.u32 %v2678, %v2679
        %v2684 = vmul.u32 %v2678, %v2680
        %v2685 = vshll.u32 %v2682, 16
        %v2686 = vshrl.u32 %v2682, 16
        %v2687 = vshll.u32 %v2683, 16
        %v2688 = vshrl.u32 %v2683, 16
        %vm2689 = vc.u32 %v2681, %v2685
        %v2690 = vsel %vm2689, 1, 0
        %v2691 = vadd.s32 %v2681, %v2685
        %v2692 = vadd.s32 %v2684, %v2690
        %vm2693 = vc.u32 %v2691, %v2687
        %v2694 = vsel %vm2693, 1, 0
        %v2695 = vadd.s32 %v2691, %v2687
        %v2696 = vadd.s32 %v2692, %v2694
        %v2697 = vadd.s32 %v2696, %v2686
        %v2698 = vadd.s32 %v2697, %v2688
        %v2699 = vmul.u32 %v2654, %v2645
        %v2700 = vadd.s32 %v2676, %v2695
        %vm2701 = vc.u32 %v2676, %v2695
        %v2702 = vadd.s32 %v2698, 1
        %v2703 = vsel %vm2701, %v2702, %v2698
        %v2704 = vadd.s32 %v2699, %v2703
        %v2705 = vadd.s32 %v2704, 536870912
        %v2706 = vshrl.u32 %v2705, 30
        %v2707 = vshll.u32 %v2706, 30
        %v2708 = vsub.s32 %v2704, %v2707
        %vm2709 = vcmp.lt.s32.totalorder %v2708, 0
        %v2710 = vsub.s32 0, %v2708
        %v2711 = vsel %vm2709, %v2710, %v2708
        %v2712 = vclz %v2711
        %v2713 = vsub.s32 %v2712, 2
        %vm2714 = vcmp.gt.s32.totalorder 0, %v2713
        %v2715 = vsel %vm2714, 0, %v2713
        %v2716 = vsub.s32 32, %v2715
        %v2717 = vshll.u32 %v2708, %v2715
        %v2718 = vshrl.u32 %v2700, %v2716
        %v2719 = vor.u32 %v2717, %v2718
        %v2720 = vsub.s32 4294967266, %v2715
        %v2721 = vadd.s32 %v2720, 127
        %v2722 = vshll.u32 %v2721, 23
        %v2723 = vor.u32 4788187, %v2722
        %v2724 = vand.u32 2147483647, %v2723
        %v2726 = vcvt.s32.f32 %v2719
        %v2727 = vmul.f32 %v2726, %v2724
        %v2728 = vxor.u32 %v2727, 2147483648
        %v2729 = vsel %vm2608, %v2728, %v2727
        %v2730 = vsub.s32 4, %v2706
        %v2731 = vsel %vm2608, %v2730, %v2706
        %v2732 = vsel %vm2607, %v588, %v2729
        %v2733 = vsel %vm2607, 0, %v2731
        %v2734 = vmul.f32 %v2732, %v2732
        %v2735 = vmul.f32 %v2734, -0.001358992
        %v2736 = vadd.f32 %v2735, 0.041655596
        %v2737 = vmul.f32 %v2734, %v2736
        %v2738 = vadd.f32 %v2737, -0.4999988
        %v2739 = vmul.f32 %v2734, %v2738
        %v2740 = vadd.f32 1.0, %v2739
        %v2741 = vmul.f32 %v2732, %v2732
        %v2742 = vmul.f32 %v2741, -0.00019511016
        %v2743 = vadd.f32 %v2742, 0.008332121
        %v2744 = vmul.f32 %v2741, %v2743
        %v2745 = vadd.f32 %v2744, -0.16666654
        %v2746 = vmul.f32 %v2741, %v2745
        %v2747 = vadd.f32 %v2746, 1.0
        %v2748 = vmul.f32 %v2747, %v2732
        %vm2749 = vweird.f32 %v588
        %v2750 = vadd.s32 %v2733, 3
        %v2751 = vand.u32 %v2750, 3
        %vm2752 = vcmp.lt.s32.totalorder %v2751, 2
        %vm2753 = vcmp.eq.s32.totalorder %v2751, 0
        %v2754 = vxor.u32 %v2748, 2147483648
        %v2755 = vsel %vm2753, %v2740, %v2754
        %vm2756 = vcmp.eq.s32.totalorder %v2751, 2
        %v2757 = vxor.u32 %v2740, 2147483648
        %v2758 = vsel %vm2756, %v2757, %v2748
        %v2759 = vsel %vm2752, %v2755, %v2758
        %v2760 = vsel %vm2749, nan, %v2759
        %v2761 = vand.u32 2147483647, %v589
        %vm2762 = vcmp.le.f32.partialorder %v2761, 0.7853982
        %vm2763 = vcmp.lt.s32.totalorder %v589, 0
        %v2764 = vand.u32 %v589, 2139095040
        %v2765 = vshrl.u32 %v2764, 23
        %v2766 = vsub.s32 %v2765, 127
        %v2767 = vand.u32 2147483647, %v589
        %v2768 = vand.u32 %v2767, 8388607
        %v2769 = vor.u32 %v2768, 8388608
        %v2770 = vsub.s32 0, %v2769
        %v2771 = vadd.s32 %v2766, 1
        %vm2772 = vcmp.gt.s32.totalorder %v2771, 0
        %v2773 = vsel %vm2772, %v2771, 0
        %v2774 = vshrl.u32 %v2773, 5
        %v2775 = vand.u32 %v2773, 31
        %v2776 = vsub.s32 32, %v2775
        %v2777 = vshrl.u32 683565275, %v2776
        %v2778 = vshll.u32 683565275, %v2775
        %v2779 = vshrl.u32 2475754826, %v2776
        %v2780 = vor.u32 %v2778, %v2779
        %v2781 = vshll.u32 2475754826, %v2775
        %v2782 = vshrl.u32 2131351028, %v2776
        %v2783 = vor.u32 %v2781, %v2782
        %v2784 = vshll.u32 2131351028, %v2775
        %v2785 = vshrl.u32 2102212464, %v2776
        %v2786 = vor.u32 %v2784, %v2785
        %v2787 = vshll.u32 2102212464, %v2775
        %v2788 = vshrl.u32 920167782, %v2776
        %v2789 = vor.u32 %v2787, %v2788
        %v2790 = vshll.u32 920167782, %v2775
        %v2791 = vshrl.u32 1326507024, %v2776
        %v2792 = vor.u32 %v2790, %v2791
        %vm2793 = vcmp.lt.s32.totalorder %v2774, 1
        %vm2794 = vcmp.lt.s32.totalorder %v2774, 2
        %vm2795 = vcmp.lt.s32.totalorder %v2774, 3
        %vm2796 = vcmp.lt.s32.totalorder %v2774, 4
        %v2797 = vsel %vm2793, %v2777, %v2780
        %v2798 = vsel %vm2796, %v2786, 2102212464
        %v2799 = vsel %vm2795, %v2783, %v2798
        %v2800 = vsel %vm2794, %v2797, %v2799
        %v2801 = vsel %vm2793, %v2780, %v2783
        %v2802 = vsel %vm2796, %v2789, 920167782
        %v2803 = vsel %vm2795, %v2786, %v2802
        %v2804 = vsel %vm2794, %v2801, %v2803
        %v2805 = vsel %vm2793, %v2783, %v2786
        %v2806 = vsel %vm2796, %v2792, 1326507024
        %v2807 = vsel %vm2795, %v2789, %v2806
        %v2808 = vsel %vm2794, %v2805, %v2807
        %v2809 = vshll.u32 %v2769, 8
        %v2810 = vand.u32 %v2809, 65535
        %v2811 = vshrl.u32 %v2809, 16
        %v2812 = vand.u32 %v2808, 65535
        %v2813 = vshrl.u32 %v2808, 16
        %v2814 = vmul.u32 %v2810, %v2812
        %v2815 = vmul.u32 %v2810, %v2813
        %v2816 = vmul.u32 %v2811, %v2812
        %v2817 = vmul.u32 %v2811, %v2813
        %v2818 = vshll.u32 %v2815, 16
        %v2819 = vshrl.u32 %v2815, 16
        %v2820 = vshll.u32 %v2816, 16
        %v2821 = vshrl.u32 %v2816, 16
        %vm2822 = vc.u32 %v2814, %v2818
        %v2823 = vsel %vm2822, 1, 0
        %v2824 = vadd.s32 %v2814, %v2818
        %v2825 = vadd.s32 %v2817, %v2823
        %vm2826 = vc.u32 %v2824, %v2820
        %v2827 = vsel %vm2826, 1, 0
        %v2828 = vadd.s32 %v2824, %v2820
        %v2829 = vadd.s32 %v2825, %v2827
        %v2830 = vadd.s32 %v2829, %v2819
        %v2831 = vadd.s32 %v2830, %v2821
        %v2832 = vand.u32 %v2809, 65535
        %v2833 = vshrl.u32 %v2809, 16
        %v2834 = vand.u32 %v2804, 65535
        %v2835 = vshrl.u32 %v2804, 16
        %v2836 = vmul.u32 %v2832, %v2834
        %v2837 = vmul.u32 %v2832, %v2835
        %v2838 = vmul.u32 %v2833, %v2834
        %v2839 = vmul.u32 %v2833, %v2835
        %v2840 = vshll.u32 %v2837, 16
        %v2841 = vshrl.u32 %v2837, 16
        %v2842 = vshll.u32 %v2838, 16
        %v2843 = vshrl.u32 %v2838, 16
        %vm2844 = vc.u32 %v2836, %v2840
        %v2845 = vsel %vm2844, 1, 0
        %v2846 = vadd.s32 %v2836, %v2840
        %v2847 = vadd.s32 %v2839, %v2845
        %vm2848 = vc.u32 %v2846, %v2842
        %v2849 = vsel %vm2848, 1, 0
        %v2850 = vadd.s32 %v2846, %v2842
        %v2851 = vadd.s32 %v2847, %v2849
        %v2852 = vadd.s32 %v2851, %v2841
        %v2853 = vadd.s32 %v2852, %v2843
        %v2854 = vmul.u32 %v2809, %v2800
        %v2855 = vadd.s32 %v2831, %v2850
        %vm2856 = vc.u32 %v2831, %v2850
        %v2857 = vadd.s32 %v2853, 1
        %v2858 = vsel %vm2856, %v2857, %v2853
        %v2859 = vadd.s32 %v2854, %v2858
        %v2860 = vadd.s32 %v2859, 536870912
        %v2861 = vshrl.u32 %v2860, 30
        %v2862 = vshll.u32 %v2861, 30
        %v2863 = vsub.s32 %v2859, %v2862
        %vm2864 = vcmp.lt.s32.totalorder %v2863, 0
        %v2865 = vsub.s32 0, %v2863
        %v2866 = vsel %vm2864, %v2865, %v2863
        %v2867 = vclz %v2866
        %v2868 = vsub.s32 %v2867, 2
        %vm2869 = vcmp.gt.s32.totalorder 0, %v2868
        %v2870 = vsel %vm2869, 0, %v2868
        %v2871 = vsub.s32 32, %v2870
        %v2872 = vshll.u32 %v2863, %v2870
        %v2873 = vshrl.u32 %v2855, %v2871
        %v2874 = vor.u32 %v2872, %v2873
        %v2875 = vsub.s32 4294967266, %v2870
        %v2876 = vadd.s32 %v2875, 127
        %v2877 = vshll.u32 %v2876, 23
        %v2878 = vor.u32 4788187, %v2877
        %v2879 = vand.u32 2147483647, %v2878
        %v2881 = vcvt.s32.f32 %v2874
        %v2882 = vmul.f32 %v2881, %v2879
        %v2883 = vxor.u32 %v2882, 2147483648
        %v2884 = vsel %vm2763, %v2883, %v2882
        %v2885 = vsub.s32 4, %v2861
        %v2886 = vsel %vm2763, %v2885, %v2861
        %v2887 = vsel %vm2762, %v589, %v2884
        %v2888 = vsel %vm2762, 0, %v2886
        %v2889 = vmul.f32 %v2887, %v2887
        %v2890 = vmul.f32 %v2889, -0.001358992
        %v2891 = vadd.f32 %v2890, 0.041655596
        %v2892 = vmul.f32 %v2889, %v2891
        %v2893 = vadd.f32 %v2892, -0.4999988
        %v2894 = vmul.f32 %v2889, %v2893
        %v2895 = vadd.f32 1.0, %v2894
        %v2896 = vmul.f32 %v2887, %v2887
        %v2897 = vmul.f32 %v2896, -0.00019511016
        %v2898 = vadd.f32 %v2897, 0.008332121
        %v2899 = vmul.f32 %v2896, %v2898
        %v2900 = vadd.f32 %v2899, -0.16666654
        %v2901 = vmul.f32 %v2896, %v2900
        %v2902 = vadd.f32 %v2901, 1.0
        %v2903 = vmul.f32 %v2902, %v2887
        %vm2904 = vweird.f32 %v589
        %v2905 = vadd.s32 %v2888, 3
        %v2906 = vand.u32 %v2905, 3
        %vm2907 = vcmp.lt.s32.totalorder %v2906, 2
        %vm2908 = vcmp.eq.s32.totalorder %v2906, 0
        %v2909 = vxor.u32 %v2903, 2147483648
        %v2910 = vsel %vm2908, %v2895, %v2909
        %vm2911 = vcmp.eq.s32.totalorder %v2906, 2
        %v2912 = vxor.u32 %v2895, 2147483648
        %v2913 = vsel %vm2911, %v2912, %v2903
        %v2914 = vsel %vm2907, %v2910, %v2913
        %v2915 = vsel %vm2904, nan, %v2914
        %v2916 = vand.u32 2147483647, %v590
        %vm2917 = vcmp.le.f32.partialorder %v2916, 0.7853982
        %vm2918 = vcmp.lt.s32.totalorder %v590, 0
        %v2919 = vand.u32 %v590, 2139095040
        %v2920 = vshrl.u32 %v2919, 23
        %v2921 = vsub.s32 %v2920, 127
        %v2922 = vand.u32 2147483647, %v590
        %v2923 = vand.u32 %v2922, 8388607
        %v2924 = vor.u32 %v2923, 8388608
        %v2925 = vsub.s32 0, %v2924
        %v2926 = vadd.s32 %v2921, 1
        %vm2927 = vcmp.gt.s32.totalorder %v2926, 0
        %v2928 = vsel %vm2927, %v2926, 0
        %v2929 = vshrl.u32 %v2928, 5
        %v2930 = vand.u32 %v2928, 31
        %v2931 = vsub.s32 32, %v2930
        %v2932 = vshrl.u32 683565275, %v2931
        %v2933 = vshll.u32 683565275, %v2930
        %v2934 = vshrl.u32 2475754826, %v2931
        %v2935 = vor.u32 %v2933, %v2934
        %v2936 = vshll.u32 2475754826, %v2930
        %v2937 = vshrl.u32 2131351028, %v2931
        %v2938 = vor.u32 %v2936, %v2937
        %v2939 = vshll.u32 2131351028, %v2930
        %v2940 = vshrl.u32 2102212464, %v2931
        %v2941 = vor.u32 %v2939, %v2940
        %v2942 = vshll.u32 2102212464, %v2930
        %v2943 = vshrl.u32 920167782, %v2931
        %v2944 = vor.u32 %v2942, %v2943
        %v2945 = vshll.u32 920167782, %v2930
        %v2946 = vshrl.u32 1326507024, %v2931
        %v2947 = vor.u32 %v2945, %v2946
        %vm2948 = vcmp.lt.s32.totalorder %v2929, 1
        %vm2949 = vcmp.lt.s32.totalorder %v2929, 2
        %vm2950 = vcmp.lt.s32.totalorder %v2929, 3
        %vm2951 = vcmp.lt.s32.totalorder %v2929, 4
        %v2952 = vsel %vm2948, %v2932, %v2935
        %v2953 = vsel %vm2951, %v2941, 2102212464
        %v2954 = vsel %vm2950, %v2938, %v2953
        %v2955 = vsel %vm2949, %v2952, %v2954
        %v2956 = vsel %vm2948, %v2935, %v2938
        %v2957 = vsel %vm2951, %v2944, 920167782
        %v2958 = vsel %vm2950, %v2941, %v2957
        %v2959 = vsel %vm2949, %v2956, %v2958
        %v2960 = vsel %vm2948, %v2938, %v2941
        %v2961 = vsel %vm2951, %v2947, 1326507024
        %v2962 = vsel %vm2950, %v2944, %v2961
        %v2963 = vsel %vm2949, %v2960, %v2962
        %v2964 = vshll.u32 %v2924, 8
        %v2965 = vand.u32 %v2964, 65535
        %v2966 = vshrl.u32 %v2964, 16
        %v2967 = vand.u32 %v2963, 65535
        %v2968 = vshrl.u32 %v2963, 16
        %v2969 = vmul.u32 %v2965, %v2967
        %v2970 = vmul.u32 %v2965, %v2968
        %v2971 = vmul.u32 %v2966, %v2967
        %v2972 = vmul.u32 %v2966, %v2968
        %v2973 = vshll.u32 %v2970, 16
        %v2974 = vshrl.u32 %v2970, 16
        %v2975 = vshll.u32 %v2971, 16
        %v2976 = vshrl.u32 %v2971, 16
        %vm2977 = vc.u32 %v2969, %v2973
        %v2978 = vsel %vm2977, 1, 0
        %v2979 = vadd.s32 %v2969, %v2973
        %v2980 = vadd.s32 %v2972, %v2978
        %vm2981 = vc.u32 %v2979, %v2975
        %v2982 = vsel %vm2981, 1, 0
        %v2983 = vadd.s32 %v2979, %v2975
        %v2984 = vadd.s32 %v2980, %v2982
        %v2985 = vadd.s32 %v2984, %v2974
        %v2986 = vadd.s32 %v2985, %v2976
        %v2987 = vand.u32 %v2964, 65535
        %v2988 = vshrl.u32 %v2964, 16
        %v2989 = vand.u32 %v2959, 65535
        %v2990 = vshrl.u32 %v2959, 16
        %v2991 = vmul.u32 %v2987, %v2989
        %v2992 = vmul.u32 %v2987, %v2990
        %v2993 = vmul.u32 %v2988, %v2989
        %v2994 = vmul.u32 %v2988, %v2990
        %v2995 = vshll.u32 %v2992, 16
        %v2996 = vshrl.u32 %v2992, 16
        %v2997 = vshll.u32 %v2993, 16
        %v2998 = vshrl.u32 %v2993, 16
        %vm2999 = vc.u32 %v2991, %v2995
        %v3000 = vsel %vm2999, 1, 0
        %v3001 = vadd.s32 %v2991, %v2995
        %v3002 = vadd.s32 %v2994, %v3000
        %vm3003 = vc.u32 %v3001, %v2997
        %v3004 = vsel %vm3003, 1, 0
        %v3005 = vadd.s32 %v3001, %v2997
        %v3006 = vadd.s32 %v3002, %v3004
        %v3007 = vadd.s32 %v3006, %v2996
        %v3008 = vadd.s32 %v3007, %v2998
        %v3009 = vmul.u32 %v2964, %v2955
        %v3010 = vadd.s32 %v2986, %v3005
        %vm3011 = vc.u32 %v2986, %v3005
        %v3012 = vadd.s32 %v3008, 1
        %v3013 = vsel %vm3011, %v3012, %v3008
        %v3014 = vadd.s32 %v3009, %v3013
        %v3015 = vadd.s32 %v3014, 536870912
        %v3016 = vshrl.u32 %v3015, 30
        %v3017 = vshll.u32 %v3016, 30
        %v3018 = vsub.s32 %v3014, %v3017
        %vm3019 = vcmp.lt.s32.totalorder %v3018, 0
        %v3020 = vsub.s32 0, %v3018
        %v3021 = vsel %vm3019, %v3020, %v3018
        %v3022 = vclz %v3021
        %v3023 = vsub.s32 %v3022, 2
        %vm3024 = vcmp.gt.s32.totalorder 0, %v3023
        %v3025 = vsel %vm3024, 0, %v3023
        %v3026 = vsub.s32 32, %v3025
        %v3027 = vshll.u32 %v3018, %v3025
        %v3028 = vshrl.u32 %v3010, %v3026
        %v3029 = vor.u32 %v3027, %v3028
        %v3030 = vsub.s32 4294967266, %v3025
        %v3031 = vadd.s32 %v3030, 127
        %v3032 = vshll.u32 %v3031, 23
        %v3033 = vor.u32 4788187, %v3032
        %v3034 = vand.u32 2147483647, %v3033
        %v3036 = vcvt.s32.f32 %v3029
        %v3037 = vmul.f32 %v3036, %v3034
        %v3038 = vxor.u32 %v3037, 2147483648
        %v3039 = vsel %vm2918, %v3038, %v3037
        %v3040 = vsub.s32 4, %v3016
        %v3041 = vsel %vm2918, %v3040, %v3016
        %v3042 = vsel %vm2917, %v590, %v3039
        %v3043 = vsel %vm2917, 0, %v3041
        %v3044 = vmul.f32 %v3042, %v3042
        %v3045 = vmul.f32 %v3044, -0.001358992
        %v3046 = vadd.f32 %v3045, 0.041655596
        %v3047 = vmul.f32 %v3044, %v3046
        %v3048 = vadd.f32 %v3047, -0.4999988
        %v3049 = vmul.f32 %v3044, %v3048
        %v3050 = vadd.f32 1.0, %v3049
        %v3051 = vmul.f32 %v3042, %v3042
        %v3052 = vmul.f32 %v3051, -0.00019511016
        %v3053 = vadd.f32 %v3052, 0.008332121
        %v3054 = vmul.f32 %v3051, %v3053
        %v3055 = vadd.f32 %v3054, -0.16666654
        %v3056 = vmul.f32 %v3051, %v3055
        %v3057 = vadd.f32 %v3056, 1.0
        %v3058 = vmul.f32 %v3057, %v3042
        %vm3059 = vweird.f32 %v590
        %v3060 = vadd.s32 %v3043, 3
        %v3061 = vand.u32 %v3060, 3
        %vm3062 = vcmp.lt.s32.totalorder %v3061, 2
        %vm3063 = vcmp.eq.s32.totalorder %v3061, 0
        %v3064 = vxor.u32 %v3058, 2147483648
        %v3065 = vsel %vm3063, %v3050, %v3064
        %vm3066 = vcmp.eq.s32.totalorder %v3061, 2
        %v3067 = vxor.u32 %v3050, 2147483648
        %v3068 = vsel %vm3066, %v3067, %v3058
        %v3069 = vsel %vm3062, %v3065, %v3068
        %v3070 = vsel %vm3059, nan, %v3069
        %3071 = vst [vmem:[%s224] sm:$0xff] %v745
        %3072 = vst [vmem:[%s224 + $0x8] sm:$0xff] %v900
        %3073 = vst [vmem:[%s224 + $0x10] sm:$0xff] %v1055
        %3074 = vst [vmem:[%s224 + $0x18] sm:$0xff] %v1210
        %3075 = vst [vmem:[%s224 + $0x20] sm:$0xff] %v1365
        %3076 = vst [vmem:[%s224 + $0x28] sm:$0xff] %v1520
        %3077 = vst [vmem:[%s224 + $0x30] sm:$0xff] %v1675
        %3078 = vst [vmem:[%s224 + $0x38] sm:$0xff] %v1830
        %3079 = vst [vmem:[%s224 + $0x40] sm:$0xff] %v1985
        %3080 = vst [vmem:[%s224 + $0x48] sm:$0xff] %v2140
        %3081 = vst [vmem:[%s224 + $0x50] sm:$0xff] %v2295
        %3082 = vst [vmem:[%s224 + $0x58] sm:$0xff] %v2450
        %3083 = vst [vmem:[%s224 + $0x60] sm:$0xff] %v2605
        %3084 = vst [vmem:[%s224 + $0x68] sm:$0xff] %v2760
        %3085 = vst [vmem:[%s224 + $0x70] sm:$0xff] %v2915
        %3086 = vst [vmem:[%s224 + $0x78] sm:$0xff] %v3070
        %s3087 = sand.u32 %s142, 1
        %s3088 = scalar_lea.sflag [#allocation3], %s3087
        %s3089 = sand.u32 %s142, 1
        %s3090 = smul.addr %s3089, 128
        %s3091 = scalar_lea.vmem [#allocation2], %s3090
        // Predicated region
        $region41: #{tpu_custom_call.1} parent=39 // pred_check
          %p3092 = pneg %p152
        $region42: #{tpu_custom_call.1} parent=39 // pred_check_branch
          %3094 = sbr.rel (%p3092) target = $region44
        $region43: #{tpu_custom_call.1} parent=39 // pred_region
          %3096 = vsyncadd %s3088, 0
          %s3097 = smul.addr %s19, 8
          %s3098 = scalar_lea.hbm %s5, %s3097
          %s3099 = sshll.u32 %s3091, 4
          %s3100 = int_to_ptr.vmem [resolvable:$true] %s3099
          %s3101 = sshll.u32 %s3098, 4
          %s3102 = int_to_ptr.hbm [resolvable:$true] %s3101
          %3107 = dma.vmem_to_hbm [thread:$0]  %s3100, 2048, %s3102, %s3088, 128, 256, 8
        $region44: #{tpu_custom_call.1} parent=39 // pred_fallthru
          _
      $region40: #{tpu_custom_call.1} parent=5 // pred_fallthru
        _
      %p3108 = scmp.le.s32.totalorder 2, %s14
      // Predicated region
      $region45: #{tpu_custom_call.1} parent=5 // pred_check
        %p3109 = pneg %p3108
      $region46: #{tpu_custom_call.1} parent=5 // pred_check_branch
        %3111 = sbr.rel (%p3109) target = $region48
      $region47: #{tpu_custom_call.1} parent=5 // pred_region
        %s3112 = ssub.s32 %s14, 2
        // Predicated region
        $region49: #{tpu_custom_call.1} parent=47 // pred_check
          %p3113 = pneg %p158
        $region50: #{tpu_custom_call.1} parent=47 // pred_check_branch
          %3115 = sbr.rel (%p3113) target = $region52
        $region51: #{tpu_custom_call.1} parent=47 // pred_region
          %s3116 = sand.u32 %s143, 1
          %s3117 = scalar_lea.sflag [#allocation3], %s3116
          %s3118 = sand.u32 %s143, 1
          %s3119 = smul.addr %s3118, 128
          %s3120 = scalar_lea.vmem [#allocation2], %s3119
          %3122 = dma.done %s3117, 2048
        $region52: #{tpu_custom_call.1} parent=47 // pred_fallthru
          _
      $region48: #{tpu_custom_call.1} parent=5 // pred_fallthru
        _
    $region6: #{tpu_custom_call.1} parent=1 // loop_footer
      %s18 = sadd.s32 1, %s14
    $region7: #{tpu_custom_call.1} parent=1 // loop_footer_branch
      %13 = sbr.rel target = $region3
    $region8: #{tpu_custom_call.1} parent=1 // loop_exit
      _
    %3123 = vsyncpa [#allocation3], 1
    %s3124 = scalar_lea.sflag [#allocation3], 1
    %3125 = vsyncpa %s3124, 1

</llo_original>
